<compile_context>
chip_gen: v6e
topology: v6e:2x2x1
jax: 0.10.0
libtpu: 0.0.40
codegen_flags: <defaults>
</compile_context>

<pallas_src>
import functools

import numpy as np
import jax
import jax.numpy as jnp
from jax import lax
from jax.experimental import pallas as pl
from jax.experimental.pallas import tpu as pltpu


# ----------------------------------------------------------------------------
# Pattern helpers (compile-time python)
# ----------------------------------------------------------------------------
_GR_GB_POS = {
    "grbg": ((0, 0), (1, 1)),
    "rggb": ((0, 1), (1, 0)),
    "gbrg": ((1, 1), (0, 0)),
    "bggr": ((1, 0), (0, 1)),
}


def _pattern_positions(pattern):
    if pattern not in _GR_GB_POS:
        raise ValueError(f"unsupported bayer pattern: {pattern}")
    pos = {}
    for idx, c in enumerate(pattern):
        rc = (idx // 2, idx % 2)
        if c in ("r", "b"):
            pos[c] = rc
    pos_gr, pos_gb = _GR_GB_POS[pattern]
    return dict(pos_r=pos["r"], pos_b=pos["b"], pos_gr=pos_gr, pos_gb=pos_gb)


def _pick_tile_rows(H, target):
    """Largest row-tile that divides H, is a multiple of 8 and <= target."""
    target = max(8, target)
    if H <= target:
        return H
    start = min(target, H)
    start -= start % 8
    for th in range(start, 7, -8):
        if H % th == 0:
            return th
    # TODO(synk): support a ragged final row tile; for now fall back to one
    # whole-image tile per batch element.
    return H


# ----------------------------------------------------------------------------
# Pallas kernel: one (batch, row-tile) per grid step
# ----------------------------------------------------------------------------
def _hamilton_adam_kernel(x_hbm, o_ref, xh, sems, *,
                          tile_rows, H, W,
                          pos_r, pos_b, pos_gr, pos_gb):
    TH = tile_rows
    G = TH + 2                          # rows needed to evaluate green (+-1 halo)
    b = pl.program_id(0)
    t = pl.program_id(1)
    r0 = t * TH                         # first output row of this tile

    # ---------------- fetch haloed raw window (TH + 6 rows) -----------------
    top = jnp.maximum(r0 - 3, 0)
    bot = jnp.minimum(r0 + TH, H - 3)
    c_top = pltpu.make_async_copy(x_hbm.at[b, pl.ds(top, 3), :],
                                  xh.at[pl.ds(0, 3), :], sems.at[0])
    c_mid = pltpu.make_async_copy(x_hbm.at[b, pl.ds(r0, TH), :],
                                  xh.at[pl.ds(3, TH), :], sems.at[1])
    c_bot = pltpu.make_async_copy(x_hbm.at[b, pl.ds(bot, 3), :],
                                  xh.at[pl.ds(TH + 3, 3), :], sems.at[2])
    c_top.start()
    c_mid.start()
    c_bot.start()
    # TODO(synk): double-buffer this window DMA across grid steps so the input
    # fetch overlaps compute (output blocks are already pipelined by Pallas).

    # ---------------- in-kernel Bayer masks from row/col parity -------------
    col_cache = {}

    def colmat(R):
        if R not in col_cache:
            col_cache[R] = lax.broadcasted_iota(jnp.int32, (R, W), 1)
        return col_cache[R]

    def pmask(row_idx, col_idx, pos):
        return jnp.logical_and((row_idx & 1) == pos[0],
                               (col_idx & 1) == pos[1])

    col_g = colmat(G)
    col_o = colmat(TH)

    rows_g = lax.broadcasted_iota(jnp.int32, (G, W), 0) + (r0 - 1)   # haloed rows
    rows_o = lax.broadcasted_iota(jnp.int32, (TH, W), 0) + r0        # output rows
    rows_gc = jnp.clip(rows_g, 0, H - 1)                             # clamped

    # green blend mask over the haloed rows (border rows get fixed later).
    is_green_g = jnp.logical_not(jnp.logical_or(pmask(rows_g, col_g, pos_r),
                                                pmask(rows_g, col_g, pos_b)))
    # pixel-class masks at the output rows.
    is_r = pmask(rows_o, col_o, pos_r)
    is_b = pmask(rows_o, col_o, pos_b)
    is_gr = pmask(rows_o, col_o, pos_gr)
    is_gb = pmask(rows_o, col_o, pos_gb)
    # masks used to build the masked chroma planes over the haloed rows; the
    # clamped row index reproduces replication padding of the masked plane at
    # the true image top/bottom.
    is_r_h = pmask(rows_gc, col_g, pos_r)
    is_b_h = pmask(rows_gc, col_g, pos_b)

    # horizontal tap with replication at the left/right image edge.
    def hshift(v, dx):
        cc = colmat(v.shape[0])
        out = pltpu.roll(v, (-dx) % W, axis=1)
        if dx == 1:
            return jnp.where(cc < W - 1, out, v)
        if dx == -1:
            return jnp.where(cc > 0, out, v)
        if dx == 2:
            r1 = pltpu.roll(v, (W - 1) % W, axis=1)
            return jnp.where(cc < W - 2, out, jnp.where(cc < W - 1, r1, v))
        if dx == -2:
            r1 = pltpu.roll(v, 1, axis=1)
            return jnp.where(cc > 1, out, jnp.where(cc > 0, r1, v))
        raise ValueError(dx)

    # ---------------- wait for the raw window, fix border replication -------
    c_top.wait()
    c_mid.wait()
    c_bot.wait()

    @pl.when(r0 == 0)
    def _():
        first = xh[3:4, :]
        xh[0:1, :] = first
        xh[1:2, :] = first
        xh[2:3, :] = first

    @pl.when(r0 + TH >= H)
    def _():
        last = xh[TH + 2:TH + 3, :]
        xh[TH + 3:TH + 4, :] = last
        xh[TH + 4:TH + 5, :] = last
        xh[TH + 5:TH + 6, :] = last

    # ---------------- algo1: green plane over rows [r0-1, r0+TH+1) ----------
    xc = xh[2:2 + G, :]              # centre rows (image rows r0-1 .. r0+TH)
    xu1 = xh[1:1 + G, :]             # row - 1
    xd1 = xh[3:3 + G, :]             # row + 1
    xu2 = xh[0:0 + G, :]             # row - 2
    xd2 = xh[4:4 + G, :]             # row + 2
    xl1 = hshift(xc, -1)
    xr1 = hshift(xc, 1)
    xl2 = hshift(xc, -2)
    xr2 = hshift(xc, 2)

    c0 = 0.5 * (xl1 + xr1)
    c1 = 0.5 * (xu1 + xd1)
    c2 = xl2 - 2.0 * xc + xr2
    c3 = xu2 - 2.0 * xc + xd2
    c4 = xl1 - xr1
    c5 = xu1 - xd1

    rawh = c0 - 0.25 * c2
    rawv = c1 - 0.25 * c3
    CLh = jnp.abs(c4) + jnp.abs(c2)
    CLv = jnp.abs(c5) + jnp.abs(c3)
    d1 = CLh - CLv
    g_int = jnp.where(d1 > 0, rawv,
                      jnp.where(d1 < 0, rawh, 0.5 * (rawv + rawh)))
    green_h = jnp.where(is_green_g, xc, g_int)

    # the padded green rows at the true image border must be replicas of the
    # border *green* row (not green computed on replicated raw rows).
    green_h = jnp.where(rows_g < 0, green_h[1:2, :], green_h)
    green_h = jnp.where(rows_g > H - 1, green_h[G - 2:G - 1, :], green_h)

    # ---------------- shared green 3x3 taps at the output rows --------------
    g0 = green_h[1:1 + TH, :]
    gu = green_h[0:TH, :]
    gd = green_h[2:2 + TH, :]
    gl, grr = hshift(g0, -1), hshift(g0, 1)
    gul, gur = hshift(gu, -1), hshift(gu, 1)
    gdl, gdr = hshift(gd, -1), hshift(gd, 1)

    cg0 = 0.25 * gl - 0.5 * g0 + 0.25 * grr
    cg1 = 0.25 * gu - 0.5 * g0 + 0.25 * gd
    cg2 = gul - 2.0 * g0 + gdr
    cg3 = gur - 2.0 * g0 + gdl
    abs_cg2 = jnp.abs(cg2)
    abs_cg3 = jnp.abs(cg3)

    x_body = xc[1:1 + TH, :]

    # ---------------- algo2: chroma correction ------------------------------
    def algo2(is_chan_h, is_own, is_g_h, is_g_v):
        xch = jnp.where(is_chan_h, xc, 0.0)     # masked chroma, haloed rows
        m0 = xch[1:1 + TH, :]
        mu = xch[0:TH, :]
        md = xch[2:2 + TH, :]
        ml, mr = hshift(m0, -1), hshift(m0, 1)
        mul, mur = hshift(mu, -1), hshift(mu, 1)
        mdl, mdr = hshift(md, -1), hshift(md, 1)

        cm0 = 0.5 * (ml + mr)
        cm1 = 0.5 * (mu + md)
        cm2 = 0.5 * (mul + mdr)
        cm3 = 0.5 * (mur + mdl)
        cm4 = mdr - mul
        cm5 = mdl - mur

        Ch = cm0 - cg0
        Cv = cm1 - cg1
        Cp = cm2 - 0.25 * cg2
        Cn = cm3 - 0.25 * cg3
        CLp = jnp.abs(cm4) + abs_cg2
        CLn = jnp.abs(cm5) + abs_cg3
        d = CLp - CLn
        ch = jnp.where(d > 0, Cn, jnp.where(d < 0, Cp, 0.5 * (Cn + Cp)))
        # own-colour pixels keep the raw sample; green pixels get the H/V
        # corrected value; the other chroma's pixels get the diagonal one.
        return jnp.where(is_own, x_body,
               jnp.where(is_g_h, Ch,
               jnp.where(is_g_v, Cv, ch)))

    red = algo2(is_r_h, is_r, is_gr, is_gb)      # mode == 1
    blue = algo2(is_b_h, is_b, is_gb, is_gr)     # mode == 2 (Gr/Gb swapped)

    o_ref[0, 0, :, :] = red
    o_ref[0, 1, :, :] = g0
    o_ref[0, 2, :, :] = blue


def hamilton_adam_pallas(x, pattern="grbg", tile_rows=256,
                         vmem_limit_bytes=48 * 1024 * 1024):
    B, H, W = x.shape
    if H < 3:
        raise ValueError("image height must be >= 3")
    x = x.astype(jnp.float32)
    TH = _pick_tile_rows(H, tile_rows)
    num_tiles = H // TH
    kernel = functools.partial(_hamilton_adam_kernel, tile_rows=TH, H=H, W=W,
                               **_pattern_positions(pattern))
    grid_spec = pltpu.PrefetchScalarGridSpec(
        num_scalar_prefetch=0,
        grid=(B, num_tiles),
        in_specs=[pl.BlockSpec(memory_space=pl.ANY)],   # raw mosaic stays in HBM
        out_specs=pl.BlockSpec((1, 3, TH, W), lambda b, t: (b, 0, t, 0)),
        scratch_shapes=[
            pltpu.VMEM((TH + 6, W), jnp.float32),        # haloed raw window
            pltpu.SemaphoreType.DMA((3,)),
        ],
    )
    return pl.pallas_call(
        kernel,
        out_shape=jax.ShapeDtypeStruct((B, 3, H, W), jnp.float32),
        grid_spec=grid_spec,
        compiler_params=pltpu.CompilerParams(
            dimension_semantics=("parallel", "parallel"),
            vmem_limit_bytes=vmem_limit_bytes),
    )(x)


# ----------------------------------------------------------------------------
# Pure-JAX reference (mirrors the PyTorch module with dense conv weights)
# ----------------------------------------------------------------------------
def bayer_masks(H, W, pattern):
    cidx = {"r": 0, "g": 1, "b": 2}
    num = [cidx[c] for c in pattern]
    mask = np.zeros((3, H, W), np.float32)
    mask[num[0], 0::2, 0::2] = 1.0
    mask[num[1], 0::2, 1::2] = 1.0
    mask[num[2], 1::2, 0::2] = 1.0
    mask[num[3], 1::2, 1::2] = 1.0
    maskGr = np.zeros((H, W), np.float32)
    maskGb = np.zeros((H, W), np.float32)
    if pattern == "grbg":
        maskGr[0::2, 0::2] = 1.0
        maskGb[1::2, 1::2] = 1.0
    elif pattern == "rggb":
        maskGr[0::2, 1::2] = 1.0
        maskGb[1::2, 0::2] = 1.0
    elif pattern == "gbrg":
        maskGb[0::2, 0::2] = 1.0
        maskGr[1::2, 1::2] = 1.0
    elif pattern == "bggr":
        maskGb[0::2, 1::2] = 1.0
        maskGr[1::2, 0::2] = 1.0
    return mask, maskGr, maskGb


def _algo1_weights():
    w = np.zeros((6, 1, 5, 5), np.float32)
    w[0, 0, 2, 1] = 0.5; w[0, 0, 2, 3] = 0.5
    w[1, 0, 1, 2] = 0.5; w[1, 0, 3, 2] = 0.5
    w[2, 0, 2, 0] = 1.0; w[2, 0, 2, 2] = -2.0; w[2, 0, 2, 4] = 1.0
    w[3, 0, 0, 2] = 1.0; w[3, 0, 2, 2] = -2.0; w[3, 0, 4, 2] = 1.0
    w[4, 0, 2, 1] = 1.0; w[4, 0, 2, 3] = -1.0
    w[5, 0, 1, 2] = 1.0; w[5, 0, 3, 2] = -1.0
    return w


def _algo2_weights():
    w1 = np.zeros((6, 1, 3, 3), np.float32)
    w2 = np.zeros((4, 1, 3, 3), np.float32)
    w1[0, 0, 1, 0] = 0.5; w1[0, 0, 1, 2] = 0.5
    w1[1, 0, 0, 1] = 0.5; w1[1, 0, 2, 1] = 0.5
    w1[2, 0, 0, 0] = 0.5; w1[2, 0, 2, 2] = 0.5
    w1[3, 0, 0, 2] = 0.5; w1[3, 0, 2, 0] = 0.5
    w1[4, 0, 0, 0] = -1.0; w1[4, 0, 2, 2] = 1.0
    w1[5, 0, 0, 2] = -1.0; w1[5, 0, 2, 0] = 1.0
    w2[0, 0, 1, 0] = 0.25; w2[0, 0, 1, 1] = -0.5; w2[0, 0, 1, 2] = 0.25
    w2[1, 0, 0, 1] = 0.25; w2[1, 0, 1, 1] = -0.5; w2[1, 0, 2, 1] = 0.25
    w2[2, 0, 0, 0] = 1.0; w2[2, 0, 1, 1] = -2.0; w2[2, 0, 2, 2] = 1.0
    w2[3, 0, 0, 2] = 1.0; w2[3, 0, 1, 1] = -2.0; w2[3, 0, 2, 0] = 1.0
    return w1, w2


def _rep_conv(x, w, pad):
    xp = jnp.pad(x, ((0, 0), (0, 0), (pad, pad), (pad, pad)), mode="edge")
    return lax.conv_general_dilated(
        xp, jnp.asarray(w), window_strides=(1, 1), padding="VALID",
        dimension_numbers=("NCHW", "OIHW", "NCHW"))


def hamilton_adam_reference(x, pattern="grbg"):
    B, H, W = x.shape
    x = x.astype(jnp.float32)
    mask_np, maskGr_np, maskGb_np = bayer_masks(H, W, pattern)
    mask = jnp.asarray(mask_np)
    maskGr = jnp.asarray(maskGr_np)[None]
    maskGb = jnp.asarray(maskGb_np)[None]
    xm = x[:, None] * mask[None]

    rawq = xm.sum(1, keepdims=True)
    cr = _rep_conv(rawq, _algo1_weights(), 2)
    rawh = cr[:, 0] - cr[:, 2] / 4
    rawv = cr[:, 1] - cr[:, 3] / 4
    CLh = jnp.abs(cr[:, 4]) + jnp.abs(cr[:, 2])
    CLv = jnp.abs(cr[:, 5]) + jnp.abs(cr[:, 3])
    loc = jnp.sign(CLh - CLv)
    green = (1 + loc) * rawv / 2 + (1 - loc) * rawh / 2
    gmask = mask[1][None, None]
    green = green[:, None] * (1 - gmask) + rawq * gmask

    w1, w2 = _algo2_weights()

    def algo2(xc, mo, mGr, mGb):
        cm = _rep_conv(xc, w1, 1)
        cg = _rep_conv(green, w2, 1)
        Ch = mGr * (cm[:, 0] - cg[:, 0])
        Cv = mGb * (cm[:, 1] - cg[:, 1])
        Cp = mo * (cm[:, 2] - cg[:, 2] / 4)
        Cn = mo * (cm[:, 3] - cg[:, 3] / 4)
        CLp = mo * (jnp.abs(cm[:, 4]) + jnp.abs(cg[:, 2]))
        CLn = mo * (jnp.abs(cm[:, 5]) + jnp.abs(cg[:, 3]))
        l = jnp.sign(CLp - CLn)
        ch = (1 + l) * Cn / 2 + (1 - l) * Cp / 2
        return (ch + Ch + Cv)[:, None] + xc

    red = algo2(xm[:, 0][:, None], mask[2][None], maskGr, maskGb)
    blue = algo2(xm[:, 2][:, None], mask[0][None], maskGb, maskGr)
    return jnp.concatenate([red, green, blue], axis=1).reshape(B, -1, H, W)


# ----------------------------------------------------------------------------
if __name__ == "__main__":
    # Case 1: multiple row tiles (exercises halo DMAs, interior tiles and the
    # top/bottom replication paths).
    x1 = jax.random.uniform(jax.random.PRNGKey(0), (2, 32, 128), dtype=jnp.float32)
    out1 = jax.block_until_ready(hamilton_adam_pallas(x1, pattern="grbg", tile_rows=8))
    ref1 = jax.block_until_ready(hamilton_adam_reference(x1, pattern="grbg"))
    assert out1.shape == (2, 3, 32, 128), out1.shape
    err1 = float(np.max(np.abs(np.asarray(out1) - np.asarray(ref1))))
    assert err1 < 1e-5, f"case1 mismatch vs reference: max abs err = {err1}"

    # Case 2: single row tile, different Bayer pattern.
    x2 = jax.random.uniform(jax.random.PRNGKey(1), (1, 16, 128), dtype=jnp.float32)
    out2 = jax.block_until_ready(hamilton_adam_pallas(x2, pattern="rggb"))
    ref2 = jax.block_until_ready(hamilton_adam_reference(x2, pattern="rggb"))
    assert out2.shape == (1, 3, 16, 128), out2.shape
    err2 = float(np.max(np.abs(np.asarray(out2) - np.asarray(ref2))))
    assert err2 < 1e-5, f"case2 mismatch vs reference: max abs err = {err2}"

    print("KERNEL_OK")
</pallas_src>

<mosaic_0001>
module attributes {stable_mosaic.version = 11 : i64} {
  func.func @_hamilton_adam_kernel(%arg0: i32, %arg1: i32, %arg2: memref<2x32x128xf32, #tpu.memory_space<any>>, %arg3: memref<1x3x8x128xf32, #tpu.memory_space<vmem>>, %arg4: memref<14x128xf32, #tpu.memory_space<vmem>>, %arg5: memref<3x!tpu.dma_semaphore, #tpu.memory_space<semaphore_mem>>) attributes {dimension_semantics = [#tpu.dimension_semantics<parallel>, #tpu.dimension_semantics<parallel>], iteration_bounds = array<i64: 2, 4>, scalar_prefetch = 0 : i64, scratch_operands = 2 : i64, tpu.core_type = #tpu.core_type<tc>, window_params = [{}, {transform_indices = @transform_1, window_bounds = array<i64: 1, 3, 8, 128>}]} {
    %c8_i32 = arith.constant 8 : i32
    %0 = arith.muli %arg1, %c8_i32 : i32
    %c3_i32 = arith.constant 3 : i32
    %1 = arith.subi %0, %c3_i32 : i32
    %c0_i32 = arith.constant 0 : i32
    %2 = arith.maxsi %1, %c0_i32 : i32
    %c8_i32_0 = arith.constant 8 : i32
    %3 = arith.addi %0, %c8_i32_0 : i32
    %c29_i32 = arith.constant 29 : i32
    %4 = arith.minsi %3, %c29_i32 : i32
    %c0_i32_1 = arith.constant 0 : i32
    %c0_i32_2 = arith.constant 0 : i32
    %5 = tpu.memref_slice %arg2[%arg0, %2, %c0_i32_2] : memref<2x32x128xf32, #tpu.memory_space<any>> -> memref<1x3x128xf32, #tpu.memory_space<any>>
    %6 = tpu.memref_squeeze %5 : memref<1x3x128xf32, #tpu.memory_space<any>> -> memref<3x128xf32, #tpu.memory_space<any>>
    %c0_i32_3 = arith.constant 0 : i32
    %c0_i32_4 = arith.constant 0 : i32
    %7 = tpu.memref_slice %arg4[%c0_i32_3, %c0_i32_4] : memref<14x128xf32, #tpu.memory_space<vmem>> -> memref<3x128xf32, #tpu.memory_space<vmem>>
    %8 = tpu.memref_slice %arg5[%c0_i32_1] : memref<3x!tpu.dma_semaphore, #tpu.memory_space<semaphore_mem>> -> memref<1x!tpu.dma_semaphore, #tpu.memory_space<semaphore_mem>>
    %9 = tpu.memref_squeeze %8 : memref<1x!tpu.dma_semaphore, #tpu.memory_space<semaphore_mem>> -> memref<!tpu.dma_semaphore, #tpu.memory_space<semaphore_mem>>
    tpu.enqueue_dma source(%6 : memref<3x128xf32, #tpu.memory_space<any>>) target(%7 : memref<3x128xf32, #tpu.memory_space<vmem>>) target_semaphore(%9 : memref<!tpu.dma_semaphore, #tpu.memory_space<semaphore_mem>>)
    %c1_i32 = arith.constant 1 : i32
    %c0_i32_5 = arith.constant 0 : i32
    %10 = tpu.memref_slice %arg2[%arg0, %0, %c0_i32_5] : memref<2x32x128xf32, #tpu.memory_space<any>> -> memref<1x8x128xf32, #tpu.memory_space<any>>
    %11 = tpu.memref_squeeze %10 : memref<1x8x128xf32, #tpu.memory_space<any>> -> memref<8x128xf32, #tpu.memory_space<any>>
    %c3_i32_6 = arith.constant 3 : i32
    %c0_i32_7 = arith.constant 0 : i32
    %12 = tpu.memref_slice %arg4[%c3_i32_6, %c0_i32_7] : memref<14x128xf32, #tpu.memory_space<vmem>> -> memref<8x128xf32, #tpu.memory_space<vmem>>
    %13 = tpu.memref_slice %arg5[%c1_i32] : memref<3x!tpu.dma_semaphore, #tpu.memory_space<semaphore_mem>> -> memref<1x!tpu.dma_semaphore, #tpu.memory_space<semaphore_mem>>
    %14 = tpu.memref_squeeze %13 : memref<1x!tpu.dma_semaphore, #tpu.memory_space<semaphore_mem>> -> memref<!tpu.dma_semaphore, #tpu.memory_space<semaphore_mem>>
    tpu.enqueue_dma source(%11 : memref<8x128xf32, #tpu.memory_space<any>>) target(%12 : memref<8x128xf32, #tpu.memory_space<vmem>>) target_semaphore(%14 : memref<!tpu.dma_semaphore, #tpu.memory_space<semaphore_mem>>)
    %c2_i32 = arith.constant 2 : i32
    %c0_i32_8 = arith.constant 0 : i32
    %15 = tpu.memref_slice %arg2[%arg0, %4, %c0_i32_8] : memref<2x32x128xf32, #tpu.memory_space<any>> -> memref<1x3x128xf32, #tpu.memory_space<any>>
    %16 = tpu.memref_squeeze %15 : memref<1x3x128xf32, #tpu.memory_space<any>> -> memref<3x128xf32, #tpu.memory_space<any>>
    %c11_i32 = arith.constant 11 : i32
    %c0_i32_9 = arith.constant 0 : i32
    %17 = tpu.memref_slice %arg4[%c11_i32, %c0_i32_9] : memref<14x128xf32, #tpu.memory_space<vmem>> -> memref<3x128xf32, #tpu.memory_space<vmem>>
    %18 = tpu.memref_slice %arg5[%c2_i32] : memref<3x!tpu.dma_semaphore, #tpu.memory_space<semaphore_mem>> -> memref<1x!tpu.dma_semaphore, #tpu.memory_space<semaphore_mem>>
    %19 = tpu.memref_squeeze %18 : memref<1x!tpu.dma_semaphore, #tpu.memory_space<semaphore_mem>> -> memref<!tpu.dma_semaphore, #tpu.memory_space<semaphore_mem>>
    tpu.enqueue_dma source(%16 : memref<3x128xf32, #tpu.memory_space<any>>) target(%17 : memref<3x128xf32, #tpu.memory_space<vmem>>) target_semaphore(%19 : memref<!tpu.dma_semaphore, #tpu.memory_space<semaphore_mem>>)
    %20 = tpu.iota {dimensions = array<i32: 1>} : vector<10x128xi32>
    %21 = tpu.iota {dimensions = array<i32: 1>} : vector<8x128xi32>
    %22 = tpu.iota {dimensions = array<i32: 0>} : vector<10x128xi32>
    %c1_i32_10 = arith.constant 1 : i32
    %23 = arith.subi %0, %c1_i32_10 : i32
    %24 = vector.broadcast %23 : i32 to vector<10x128xi32>
    %25 = arith.addi %22, %24 : vector<10x128xi32>
    %26 = tpu.iota {dimensions = array<i32: 0>} : vector<8x128xi32>
    %27 = vector.broadcast %0 : i32 to vector<8x128xi32>
    %28 = arith.addi %26, %27 : vector<8x128xi32>
    %c0_i32_11 = arith.constant 0 : i32
    %c31_i32 = arith.constant 31 : i32
    %29 = vector.broadcast %c0_i32_11 : i32 to vector<10x128xi32>
    %30 = arith.maxsi %29, %25 : vector<10x128xi32>
    %31 = vector.broadcast %c31_i32 : i32 to vector<10x128xi32>
    %32 = arith.minsi %31, %30 : vector<10x128xi32>
    %c1_i32_12 = arith.constant 1 : i32
    %33 = vector.broadcast %c1_i32_12 : i32 to vector<10x128xi32>
    %34 = arith.andi %25, %33 : vector<10x128xi32>
    %c0_i32_13 = arith.constant 0 : i32
    %35 = vector.broadcast %c0_i32_13 : i32 to vector<10x128xi32>
    %36 = arith.cmpi eq, %34, %35 : vector<10x128xi32>
    %c1_i32_14 = arith.constant 1 : i32
    %37 = vector.broadcast %c1_i32_14 : i32 to vector<10x128xi32>
    %38 = arith.andi %20, %37 : vector<10x128xi32>
    %c1_i32_15 = arith.constant 1 : i32
    %39 = vector.broadcast %c1_i32_15 : i32 to vector<10x128xi32>
    %40 = arith.cmpi eq, %38, %39 : vector<10x128xi32>
    %41 = arith.andi %36, %40 : vector<10x128xi1>
    %c1_i32_16 = arith.constant 1 : i32
    %42 = vector.broadcast %c1_i32_16 : i32 to vector<10x128xi32>
    %43 = arith.andi %25, %42 : vector<10x128xi32>
    %c1_i32_17 = arith.constant 1 : i32
    %44 = vector.broadcast %c1_i32_17 : i32 to vector<10x128xi32>
    %45 = arith.cmpi eq, %43, %44 : vector<10x128xi32>
    %c1_i32_18 = arith.constant 1 : i32
    %46 = vector.broadcast %c1_i32_18 : i32 to vector<10x128xi32>
    %47 = arith.andi %20, %46 : vector<10x128xi32>
    %c0_i32_19 = arith.constant 0 : i32
    %48 = vector.broadcast %c0_i32_19 : i32 to vector<10x128xi32>
    %49 = arith.cmpi eq, %47, %48 : vector<10x128xi32>
    %50 = arith.andi %45, %49 : vector<10x128xi1>
    %51 = arith.ori %41, %50 : vector<10x128xi1>
    %cst = arith.constant dense<true> : vector<10x128xi1>
    %52 = arith.xori %51, %cst : vector<10x128xi1>
    %c1_i32_20 = arith.constant 1 : i32
    %53 = vector.broadcast %c1_i32_20 : i32 to vector<8x128xi32>
    %54 = arith.andi %28, %53 : vector<8x128xi32>
    %c0_i32_21 = arith.constant 0 : i32
    %55 = vector.broadcast %c0_i32_21 : i32 to vector<8x128xi32>
    %56 = arith.cmpi eq, %54, %55 : vector<8x128xi32>
    %c1_i32_22 = arith.constant 1 : i32
    %57 = vector.broadcast %c1_i32_22 : i32 to vector<8x128xi32>
    %58 = arith.andi %21, %57 : vector<8x128xi32>
    %c1_i32_23 = arith.constant 1 : i32
    %59 = vector.broadcast %c1_i32_23 : i32 to vector<8x128xi32>
    %60 = arith.cmpi eq, %58, %59 : vector<8x128xi32>
    %61 = arith.andi %56, %60 : vector<8x128xi1>
    %c1_i32_24 = arith.constant 1 : i32
    %62 = vector.broadcast %c1_i32_24 : i32 to vector<8x128xi32>
    %63 = arith.andi %28, %62 : vector<8x128xi32>
    %c1_i32_25 = arith.constant 1 : i32
    %64 = vector.broadcast %c1_i32_25 : i32 to vector<8x128xi32>
    %65 = arith.cmpi eq, %63, %64 : vector<8x128xi32>
    %c1_i32_26 = arith.constant 1 : i32
    %66 = vector.broadcast %c1_i32_26 : i32 to vector<8x128xi32>
    %67 = arith.andi %21, %66 : vector<8x128xi32>
    %c0_i32_27 = arith.constant 0 : i32
    %68 = vector.broadcast %c0_i32_27 : i32 to vector<8x128xi32>
    %69 = arith.cmpi eq, %67, %68 : vector<8x128xi32>
    %70 = arith.andi %65, %69 : vector<8x128xi1>
    %c1_i32_28 = arith.constant 1 : i32
    %71 = vector.broadcast %c1_i32_28 : i32 to vector<8x128xi32>
    %72 = arith.andi %28, %71 : vector<8x128xi32>
    %c0_i32_29 = arith.constant 0 : i32
    %73 = vector.broadcast %c0_i32_29 : i32 to vector<8x128xi32>
    %74 = arith.cmpi eq, %72, %73 : vector<8x128xi32>
    %c1_i32_30 = arith.constant 1 : i32
    %75 = vector.broadcast %c1_i32_30 : i32 to vector<8x128xi32>
    %76 = arith.andi %21, %75 : vector<8x128xi32>
    %c0_i32_31 = arith.constant 0 : i32
    %77 = vector.broadcast %c0_i32_31 : i32 to vector<8x128xi32>
    %78 = arith.cmpi eq, %76, %77 : vector<8x128xi32>
    %79 = arith.andi %74, %78 : vector<8x128xi1>
    %c1_i32_32 = arith.constant 1 : i32
    %80 = vector.broadcast %c1_i32_32 : i32 to vector<8x128xi32>
    %81 = arith.andi %28, %80 : vector<8x128xi32>
    %c1_i32_33 = arith.constant 1 : i32
    %82 = vector.broadcast %c1_i32_33 : i32 to vector<8x128xi32>
    %83 = arith.cmpi eq, %81, %82 : vector<8x128xi32>
    %c1_i32_34 = arith.constant 1 : i32
    %84 = vector.broadcast %c1_i32_34 : i32 to vector<8x128xi32>
    %85 = arith.andi %21, %84 : vector<8x128xi32>
    %c1_i32_35 = arith.constant 1 : i32
    %86 = vector.broadcast %c1_i32_35 : i32 to vector<8x128xi32>
    %87 = arith.cmpi eq, %85, %86 : vector<8x128xi32>
    %88 = arith.andi %83, %87 : vector<8x128xi1>
    %c1_i32_36 = arith.constant 1 : i32
    %89 = vector.broadcast %c1_i32_36 : i32 to vector<10x128xi32>
    %90 = arith.andi %32, %89 : vector<10x128xi32>
    %c0_i32_37 = arith.constant 0 : i32
    %91 = vector.broadcast %c0_i32_37 : i32 to vector<10x128xi32>
    %92 = arith.cmpi eq, %90, %91 : vector<10x128xi32>
    %c1_i32_38 = arith.constant 1 : i32
    %93 = vector.broadcast %c1_i32_38 : i32 to vector<10x128xi32>
    %94 = arith.andi %20, %93 : vector<10x128xi32>
    %c1_i32_39 = arith.constant 1 : i32
    %95 = vector.broadcast %c1_i32_39 : i32 to vector<10x128xi32>
    %96 = arith.cmpi eq, %94, %95 : vector<10x128xi32>
    %97 = arith.andi %92, %96 : vector<10x128xi1>
    %c1_i32_40 = arith.constant 1 : i32
    %98 = vector.broadcast %c1_i32_40 : i32 to vector<10x128xi32>
    %99 = arith.andi %32, %98 : vector<10x128xi32>
    %c1_i32_41 = arith.constant 1 : i32
    %100 = vector.broadcast %c1_i32_41 : i32 to vector<10x128xi32>
    %101 = arith.cmpi eq, %99, %100 : vector<10x128xi32>
    %c1_i32_42 = arith.constant 1 : i32
    %102 = vector.broadcast %c1_i32_42 : i32 to vector<10x128xi32>
    %103 = arith.andi %20, %102 : vector<10x128xi32>
    %c0_i32_43 = arith.constant 0 : i32
    %104 = vector.broadcast %c0_i32_43 : i32 to vector<10x128xi32>
    %105 = arith.cmpi eq, %103, %104 : vector<10x128xi32>
    %106 = arith.andi %101, %105 : vector<10x128xi1>
    %c0_i32_44 = arith.constant 0 : i32
    %c0_i32_45 = arith.constant 0 : i32
    %107 = tpu.memref_slice %arg2[%arg0, %2, %c0_i32_45] : memref<2x32x128xf32, #tpu.memory_space<any>> -> memref<1x3x128xf32, #tpu.memory_space<any>>
    %108 = tpu.memref_squeeze %107 : memref<1x3x128xf32, #tpu.memory_space<any>> -> memref<3x128xf32, #tpu.memory_space<any>>
    %c0_i32_46 = arith.constant 0 : i32
    %c0_i32_47 = arith.constant 0 : i32
    %109 = tpu.memref_slice %arg4[%c0_i32_46, %c0_i32_47] : memref<14x128xf32, #tpu.memory_space<vmem>> -> memref<3x128xf32, #tpu.memory_space<vmem>>
    %110 = tpu.memref_slice %arg5[%c0_i32_44] : memref<3x!tpu.dma_semaphore, #tpu.memory_space<semaphore_mem>> -> memref<1x!tpu.dma_semaphore, #tpu.memory_space<semaphore_mem>>
    %111 = tpu.memref_squeeze %110 : memref<1x!tpu.dma_semaphore, #tpu.memory_space<semaphore_mem>> -> memref<!tpu.dma_semaphore, #tpu.memory_space<semaphore_mem>>
    tpu.wait_dma2 semaphore(%111 : memref<!tpu.dma_semaphore, #tpu.memory_space<semaphore_mem>>) src(%108 : memref<3x128xf32, #tpu.memory_space<any>>) dst(%109 : memref<3x128xf32, #tpu.memory_space<vmem>>)
    %c1_i32_48 = arith.constant 1 : i32
    %c0_i32_49 = arith.constant 0 : i32
    %112 = tpu.memref_slice %arg2[%arg0, %0, %c0_i32_49] : memref<2x32x128xf32, #tpu.memory_space<any>> -> memref<1x8x128xf32, #tpu.memory_space<any>>
    %113 = tpu.memref_squeeze %112 : memref<1x8x128xf32, #tpu.memory_space<any>> -> memref<8x128xf32, #tpu.memory_space<any>>
    %c3_i32_50 = arith.constant 3 : i32
    %c0_i32_51 = arith.constant 0 : i32
    %114 = tpu.memref_slice %arg4[%c3_i32_50, %c0_i32_51] : memref<14x128xf32, #tpu.memory_space<vmem>> -> memref<8x128xf32, #tpu.memory_space<vmem>>
    %115 = tpu.memref_slice %arg5[%c1_i32_48] : memref<3x!tpu.dma_semaphore, #tpu.memory_space<semaphore_mem>> -> memref<1x!tpu.dma_semaphore, #tpu.memory_space<semaphore_mem>>
    %116 = tpu.memref_squeeze %115 : memref<1x!tpu.dma_semaphore, #tpu.memory_space<semaphore_mem>> -> memref<!tpu.dma_semaphore, #tpu.memory_space<semaphore_mem>>
    tpu.wait_dma2 semaphore(%116 : memref<!tpu.dma_semaphore, #tpu.memory_space<semaphore_mem>>) src(%113 : memref<8x128xf32, #tpu.memory_space<any>>) dst(%114 : memref<8x128xf32, #tpu.memory_space<vmem>>)
    %c2_i32_52 = arith.constant 2 : i32
    %c0_i32_53 = arith.constant 0 : i32
    %117 = tpu.memref_slice %arg2[%arg0, %4, %c0_i32_53] : memref<2x32x128xf32, #tpu.memory_space<any>> -> memref<1x3x128xf32, #tpu.memory_space<any>>
    %118 = tpu.memref_squeeze %117 : memref<1x3x128xf32, #tpu.memory_space<any>> -> memref<3x128xf32, #tpu.memory_space<any>>
    %c11_i32_54 = arith.constant 11 : i32
    %c0_i32_55 = arith.constant 0 : i32
    %119 = tpu.memref_slice %arg4[%c11_i32_54, %c0_i32_55] : memref<14x128xf32, #tpu.memory_space<vmem>> -> memref<3x128xf32, #tpu.memory_space<vmem>>
    %120 = tpu.memref_slice %arg5[%c2_i32_52] : memref<3x!tpu.dma_semaphore, #tpu.memory_space<semaphore_mem>> -> memref<1x!tpu.dma_semaphore, #tpu.memory_space<semaphore_mem>>
    %121 = tpu.memref_squeeze %120 : memref<1x!tpu.dma_semaphore, #tpu.memory_space<semaphore_mem>> -> memref<!tpu.dma_semaphore, #tpu.memory_space<semaphore_mem>>
    tpu.wait_dma2 semaphore(%121 : memref<!tpu.dma_semaphore, #tpu.memory_space<semaphore_mem>>) src(%118 : memref<3x128xf32, #tpu.memory_space<any>>) dst(%119 : memref<3x128xf32, #tpu.memory_space<vmem>>)
    %c0_i32_56 = arith.constant 0 : i32
    %122 = arith.cmpi eq, %0, %c0_i32_56 : i32
    %123 = arith.extui %122 : i1 to i32
    %c0_i32_57 = arith.constant 0 : i32
    %124 = arith.cmpi ne, %123, %c0_i32_57 : i32
    scf.if %124 {
      %c3_162 = arith.constant 3 : index
      %c0_163 = arith.constant 0 : index
      %408 = vector.load %arg4[%c3_162, %c0_163] : memref<14x128xf32, #tpu.memory_space<vmem>>, vector<1x128xf32>
      %c0_164 = arith.constant 0 : index
      %c0_165 = arith.constant 0 : index
      %409 = vector.load %arg4[%c0_164, %c0_165] : memref<14x128xf32, #tpu.memory_space<vmem>>, vector<1x128xf32>
      tpu.vector_store %arg4[%c0_164, %c0_165], %408 {strides = array<i32>} : memref<14x128xf32, #tpu.memory_space<vmem>>, vector<1x128xf32>,
      %c1_166 = arith.constant 1 : index
      %c0_167 = arith.constant 0 : index
      %410 = vector.load %arg4[%c1_166, %c0_167] : memref<14x128xf32, #tpu.memory_space<vmem>>, vector<1x128xf32>
      tpu.vector_store %arg4[%c1_166, %c0_167], %408 {strides = array<i32>} : memref<14x128xf32, #tpu.memory_space<vmem>>, vector<1x128xf32>,
      %c2_168 = arith.constant 2 : index
      %c0_169 = arith.constant 0 : index
      %411 = vector.load %arg4[%c2_168, %c0_169] : memref<14x128xf32, #tpu.memory_space<vmem>>, vector<1x128xf32>
      tpu.vector_store %arg4[%c2_168, %c0_169], %408 {strides = array<i32>} : memref<14x128xf32, #tpu.memory_space<vmem>>, vector<1x128xf32>,
    } else {
    }
    %c8_i32_58 = arith.constant 8 : i32
    %125 = arith.addi %0, %c8_i32_58 : i32
    %c32_i32 = arith.constant 32 : i32
    %126 = arith.cmpi sge, %125, %c32_i32 : i32
    %127 = arith.extui %126 : i1 to i32
    %c0_i32_59 = arith.constant 0 : i32
    %128 = arith.cmpi ne, %127, %c0_i32_59 : i32
    scf.if %128 {
      %c10 = arith.constant 10 : index
      %c0_162 = arith.constant 0 : index
      %408 = vector.load %arg4[%c10, %c0_162] : memref<14x128xf32, #tpu.memory_space<vmem>>, vector<1x128xf32>
      %c11 = arith.constant 11 : index
      %c0_163 = arith.constant 0 : index
      %409 = vector.load %arg4[%c11, %c0_163] : memref<14x128xf32, #tpu.memory_space<vmem>>, vector<1x128xf32>
      tpu.vector_store %arg4[%c11, %c0_163], %408 {strides = array<i32>} : memref<14x128xf32, #tpu.memory_space<vmem>>, vector<1x128xf32>,
      %c12 = arith.constant 12 : index
      %c0_164 = arith.constant 0 : index
      %410 = vector.load %arg4[%c12, %c0_164] : memref<14x128xf32, #tpu.memory_space<vmem>>, vector<1x128xf32>
      tpu.vector_store %arg4[%c12, %c0_164], %408 {strides = array<i32>} : memref<14x128xf32, #tpu.memory_space<vmem>>, vector<1x128xf32>,
      %c13 = arith.constant 13 : index
      %c0_165 = arith.constant 0 : index
      %411 = vector.load %arg4[%c13, %c0_165] : memref<14x128xf32, #tpu.memory_space<vmem>>, vector<1x128xf32>
      tpu.vector_store %arg4[%c13, %c0_165], %408 {strides = array<i32>} : memref<14x128xf32, #tpu.memory_space<vmem>>, vector<1x128xf32>,
    } else {
    }
    %c2 = arith.constant 2 : index
    %c0 = arith.constant 0 : index
    %129 = vector.load %arg4[%c2, %c0] : memref<14x128xf32, #tpu.memory_space<vmem>>, vector<10x128xf32>
    %c1 = arith.constant 1 : index
    %c0_60 = arith.constant 0 : index
    %130 = vector.load %arg4[%c1, %c0_60] : memref<14x128xf32, #tpu.memory_space<vmem>>, vector<10x128xf32>
    %c3 = arith.constant 3 : index
    %c0_61 = arith.constant 0 : index
    %131 = vector.load %arg4[%c3, %c0_61] : memref<14x128xf32, #tpu.memory_space<vmem>>, vector<10x128xf32>
    %c0_62 = arith.constant 0 : index
    %c0_63 = arith.constant 0 : index
    %132 = vector.load %arg4[%c0_62, %c0_63] : memref<14x128xf32, #tpu.memory_space<vmem>>, vector<10x128xf32>
    %c4 = arith.constant 4 : index
    %c0_64 = arith.constant 0 : index
    %133 = vector.load %arg4[%c4, %c0_64] : memref<14x128xf32, #tpu.memory_space<vmem>>, vector<10x128xf32>
    %c1_i32_65 = arith.constant 1 : i32
    %134 = tpu.dynamic_rotate %129 by %c1_i32_65 dim 1 : vector<10x128xf32>, i32 -> vector<10x128xf32>
    %c0_i32_66 = arith.constant 0 : i32
    %135 = vector.broadcast %c0_i32_66 : i32 to vector<10x128xi32>
    %136 = arith.cmpi sgt, %20, %135 : vector<10x128xi32>
    %137 = arith.select %136, %134, %129 : vector<10x128xi1>, vector<10x128xf32>
    %c127_i32 = arith.constant 127 : i32
    %138 = tpu.dynamic_rotate %129 by %c127_i32 dim 1 : vector<10x128xf32>, i32 -> vector<10x128xf32>
    %c127_i32_67 = arith.constant 127 : i32
    %139 = vector.broadcast %c127_i32_67 : i32 to vector<10x128xi32>
    %140 = arith.cmpi slt, %20, %139 : vector<10x128xi32>
    %141 = arith.select %140, %138, %129 : vector<10x128xi1>, vector<10x128xf32>
    %c2_i32_68 = arith.constant 2 : i32
    %142 = tpu.dynamic_rotate %129 by %c2_i32_68 dim 1 : vector<10x128xf32>, i32 -> vector<10x128xf32>
    %c1_i32_69 = arith.constant 1 : i32
    %143 = tpu.dynamic_rotate %129 by %c1_i32_69 dim 1 : vector<10x128xf32>, i32 -> vector<10x128xf32>
    %c1_i32_70 = arith.constant 1 : i32
    %144 = vector.broadcast %c1_i32_70 : i32 to vector<10x128xi32>
    %145 = arith.cmpi sgt, %20, %144 : vector<10x128xi32>
    %c0_i32_71 = arith.constant 0 : i32
    %146 = vector.broadcast %c0_i32_71 : i32 to vector<10x128xi32>
    %147 = arith.cmpi sgt, %20, %146 : vector<10x128xi32>
    %148 = arith.select %147, %143, %129 : vector<10x128xi1>, vector<10x128xf32>
    %149 = arith.select %145, %142, %148 : vector<10x128xi1>, vector<10x128xf32>
    %c126_i32 = arith.constant 126 : i32
    %150 = tpu.dynamic_rotate %129 by %c126_i32 dim 1 : vector<10x128xf32>, i32 -> vector<10x128xf32>
    %c127_i32_72 = arith.constant 127 : i32
    %151 = tpu.dynamic_rotate %129 by %c127_i32_72 dim 1 : vector<10x128xf32>, i32 -> vector<10x128xf32>
    %c126_i32_73 = arith.constant 126 : i32
    %152 = vector.broadcast %c126_i32_73 : i32 to vector<10x128xi32>
    %153 = arith.cmpi slt, %20, %152 : vector<10x128xi32>
    %c127_i32_74 = arith.constant 127 : i32
    %154 = vector.broadcast %c127_i32_74 : i32 to vector<10x128xi32>
    %155 = arith.cmpi slt, %20, %154 : vector<10x128xi32>
    %156 = arith.select %155, %151, %129 : vector<10x128xi1>, vector<10x128xf32>
    %157 = arith.select %153, %150, %156 : vector<10x128xi1>, vector<10x128xf32>
    %158 = arith.addf %137, %141 : vector<10x128xf32>
    %cst_75 = arith.constant 5.000000e-01 : f32
    %159 = vector.broadcast %cst_75 : f32 to vector<10x128xf32>
    %160 = arith.mulf %159, %158 : vector<10x128xf32>
    %161 = arith.addf %130, %131 : vector<10x128xf32>
    %cst_76 = arith.constant 5.000000e-01 : f32
    %162 = vector.broadcast %cst_76 : f32 to vector<10x128xf32>
    %163 = arith.mulf %162, %161 : vector<10x128xf32>
    %cst_77 = arith.constant 2.000000e+00 : f32
    %164 = vector.broadcast %cst_77 : f32 to vector<10x128xf32>
    %165 = arith.mulf %164, %129 : vector<10x128xf32>
    %166 = arith.subf %149, %165 : vector<10x128xf32>
    %167 = arith.addf %166, %157 : vector<10x128xf32>
    %cst_78 = arith.constant 2.000000e+00 : f32
    %168 = vector.broadcast %cst_78 : f32 to vector<10x128xf32>
    %169 = arith.mulf %168, %129 : vector<10x128xf32>
    %170 = arith.subf %132, %169 : vector<10x128xf32>
    %171 = arith.addf %170, %133 : vector<10x128xf32>
    %172 = arith.subf %137, %141 : vector<10x128xf32>
    %173 = arith.subf %130, %131 : vector<10x128xf32>
    %cst_79 = arith.constant 2.500000e-01 : f32
    %174 = vector.broadcast %cst_79 : f32 to vector<10x128xf32>
    %175 = arith.mulf %174, %167 : vector<10x128xf32>
    %176 = arith.subf %160, %175 : vector<10x128xf32>
    %cst_80 = arith.constant 2.500000e-01 : f32
    %177 = vector.broadcast %cst_80 : f32 to vector<10x128xf32>
    %178 = arith.mulf %177, %171 : vector<10x128xf32>
    %179 = arith.subf %163, %178 : vector<10x128xf32>
    %180 = math.absf %172 : vector<10x128xf32>
    %181 = math.absf %167 : vector<10x128xf32>
    %182 = arith.addf %180, %181 : vector<10x128xf32>
    %183 = math.absf %173 : vector<10x128xf32>
    %184 = math.absf %171 : vector<10x128xf32>
    %185 = arith.addf %183, %184 : vector<10x128xf32>
    %186 = arith.subf %182, %185 : vector<10x128xf32>
    %cst_81 = arith.constant 0.000000e+00 : f32
    %187 = vector.broadcast %cst_81 : f32 to vector<10x128xf32>
    %188 = arith.cmpf ogt, %186, %187 : vector<10x128xf32>
    %cst_82 = arith.constant 0.000000e+00 : f32
    %189 = vector.broadcast %cst_82 : f32 to vector<10x128xf32>
    %190 = arith.cmpf olt, %186, %189 : vector<10x128xf32>
    %191 = arith.addf %179, %176 : vector<10x128xf32>
    %cst_83 = arith.constant 5.000000e-01 : f32
    %192 = vector.broadcast %cst_83 : f32 to vector<10x128xf32>
    %193 = arith.mulf %192, %191 : vector<10x128xf32>
    %194 = arith.select %190, %176, %193 : vector<10x128xi1>, vector<10x128xf32>
    %195 = arith.select %188, %179, %194 : vector<10x128xi1>, vector<10x128xf32>
    %196 = arith.select %52, %129, %195 : vector<10x128xi1>, vector<10x128xf32>
    %c0_i32_84 = arith.constant 0 : i32
    %197 = vector.broadcast %c0_i32_84 : i32 to vector<10x128xi32>
    %198 = arith.cmpi slt, %25, %197 : vector<10x128xi32>
    %199 = vector.extract_strided_slice %196 {offsets = [1, 0], sizes = [1, 128], strides = [1, 1]} : vector<10x128xf32> to vector<1x128xf32>
    %200 = vector.shape_cast %199 : vector<1x128xf32> to vector<1x128xf32>
    %201 = vector.broadcast %200 : vector<1x128xf32> to vector<10x128xf32>
    %202 = arith.select %198, %201, %196 : vector<10x128xi1>, vector<10x128xf32>
    %c31_i32_85 = arith.constant 31 : i32
    %203 = vector.broadcast %c31_i32_85 : i32 to vector<10x128xi32>
    %204 = arith.cmpi sgt, %25, %203 : vector<10x128xi32>
    %205 = vector.extract_strided_slice %202 {offsets = [8, 0], sizes = [1, 128], strides = [1, 1]} : vector<10x128xf32> to vector<1x128xf32>
    %206 = vector.shape_cast %205 : vector<1x128xf32> to vector<1x128xf32>
    %207 = vector.broadcast %206 : vector<1x128xf32> to vector<10x128xf32>
    %208 = arith.select %204, %207, %202 : vector<10x128xi1>, vector<10x128xf32>
    %209 = vector.extract_strided_slice %208 {offsets = [1, 0], sizes = [8, 128], strides = [1, 1]} : vector<10x128xf32> to vector<8x128xf32>
    %210 = vector.extract_strided_slice %208 {offsets = [0, 0], sizes = [8, 128], strides = [1, 1]} : vector<10x128xf32> to vector<8x128xf32>
    %211 = vector.extract_strided_slice %208 {offsets = [2, 0], sizes = [8, 128], strides = [1, 1]} : vector<10x128xf32> to vector<8x128xf32>
    %c1_i32_86 = arith.constant 1 : i32
    %212 = tpu.dynamic_rotate %209 by %c1_i32_86 dim 1 : vector<8x128xf32>, i32 -> vector<8x128xf32>
    %c0_i32_87 = arith.constant 0 : i32
    %213 = vector.broadcast %c0_i32_87 : i32 to vector<8x128xi32>
    %214 = arith.cmpi sgt, %21, %213 : vector<8x128xi32>
    %215 = arith.select %214, %212, %209 : vector<8x128xi1>, vector<8x128xf32>
    %c127_i32_88 = arith.constant 127 : i32
    %216 = tpu.dynamic_rotate %209 by %c127_i32_88 dim 1 : vector<8x128xf32>, i32 -> vector<8x128xf32>
    %c127_i32_89 = arith.constant 127 : i32
    %217 = vector.broadcast %c127_i32_89 : i32 to vector<8x128xi32>
    %218 = arith.cmpi slt, %21, %217 : vector<8x128xi32>
    %219 = arith.select %218, %216, %209 : vector<8x128xi1>, vector<8x128xf32>
    %c1_i32_90 = arith.constant 1 : i32
    %220 = tpu.dynamic_rotate %210 by %c1_i32_90 dim 1 : vector<8x128xf32>, i32 -> vector<8x128xf32>
    %c0_i32_91 = arith.constant 0 : i32
    %221 = vector.broadcast %c0_i32_91 : i32 to vector<8x128xi32>
    %222 = arith.cmpi sgt, %21, %221 : vector<8x128xi32>
    %223 = arith.select %222, %220, %210 : vector<8x128xi1>, vector<8x128xf32>
    %c127_i32_92 = arith.constant 127 : i32
    %224 = tpu.dynamic_rotate %210 by %c127_i32_92 dim 1 : vector<8x128xf32>, i32 -> vector<8x128xf32>
    %c127_i32_93 = arith.constant 127 : i32
    %225 = vector.broadcast %c127_i32_93 : i32 to vector<8x128xi32>
    %226 = arith.cmpi slt, %21, %225 : vector<8x128xi32>
    %227 = arith.select %226, %224, %210 : vector<8x128xi1>, vector<8x128xf32>
    %c1_i32_94 = arith.constant 1 : i32
    %228 = tpu.dynamic_rotate %211 by %c1_i32_94 dim 1 : vector<8x128xf32>, i32 -> vector<8x128xf32>
    %c0_i32_95 = arith.constant 0 : i32
    %229 = vector.broadcast %c0_i32_95 : i32 to vector<8x128xi32>
    %230 = arith.cmpi sgt, %21, %229 : vector<8x128xi32>
    %231 = arith.select %230, %228, %211 : vector<8x128xi1>, vector<8x128xf32>
    %c127_i32_96 = arith.constant 127 : i32
    %232 = tpu.dynamic_rotate %211 by %c127_i32_96 dim 1 : vector<8x128xf32>, i32 -> vector<8x128xf32>
    %c127_i32_97 = arith.constant 127 : i32
    %233 = vector.broadcast %c127_i32_97 : i32 to vector<8x128xi32>
    %234 = arith.cmpi slt, %21, %233 : vector<8x128xi32>
    %235 = arith.select %234, %232, %211 : vector<8x128xi1>, vector<8x128xf32>
    %cst_98 = arith.constant 2.500000e-01 : f32
    %236 = vector.broadcast %cst_98 : f32 to vector<8x128xf32>
    %237 = arith.mulf %236, %215 : vector<8x128xf32>
    %cst_99 = arith.constant 5.000000e-01 : f32
    %238 = vector.broadcast %cst_99 : f32 to vector<8x128xf32>
    %239 = arith.mulf %238, %209 : vector<8x128xf32>
    %240 = arith.subf %237, %239 : vector<8x128xf32>
    %cst_100 = arith.constant 2.500000e-01 : f32
    %241 = vector.broadcast %cst_100 : f32 to vector<8x128xf32>
    %242 = arith.mulf %241, %219 : vector<8x128xf32>
    %243 = arith.addf %240, %242 : vector<8x128xf32>
    %cst_101 = arith.constant 2.500000e-01 : f32
    %244 = vector.broadcast %cst_101 : f32 to vector<8x128xf32>
    %245 = arith.mulf %244, %210 : vector<8x128xf32>
    %cst_102 = arith.constant 5.000000e-01 : f32
    %246 = vector.broadcast %cst_102 : f32 to vector<8x128xf32>
    %247 = arith.mulf %246, %209 : vector<8x128xf32>
    %248 = arith.subf %245, %247 : vector<8x128xf32>
    %cst_103 = arith.constant 2.500000e-01 : f32
    %249 = vector.broadcast %cst_103 : f32 to vector<8x128xf32>
    %250 = arith.mulf %249, %211 : vector<8x128xf32>
    %251 = arith.addf %248, %250 : vector<8x128xf32>
    %cst_104 = arith.constant 2.000000e+00 : f32
    %252 = vector.broadcast %cst_104 : f32 to vector<8x128xf32>
    %253 = arith.mulf %252, %209 : vector<8x128xf32>
    %254 = arith.subf %223, %253 : vector<8x128xf32>
    %255 = arith.addf %254, %235 : vector<8x128xf32>
    %cst_105 = arith.constant 2.000000e+00 : f32
    %256 = vector.broadcast %cst_105 : f32 to vector<8x128xf32>
    %257 = arith.mulf %256, %209 : vector<8x128xf32>
    %258 = arith.subf %227, %257 : vector<8x128xf32>
    %259 = arith.addf %258, %231 : vector<8x128xf32>
    %260 = math.absf %255 : vector<8x128xf32>
    %261 = math.absf %259 : vector<8x128xf32>
    %262 = vector.extract_strided_slice %129 {offsets = [1, 0], sizes = [8, 128], strides = [1, 1]} : vector<10x128xf32> to vector<8x128xf32>
    %cst_106 = arith.constant 0.000000e+00 : f32
    %263 = vector.broadcast %cst_106 : f32 to vector<10x128xf32>
    %264 = arith.select %97, %129, %263 : vector<10x128xi1>, vector<10x128xf32>
    %265 = vector.extract_strided_slice %264 {offsets = [1, 0], sizes = [8, 128], strides = [1, 1]} : vector<10x128xf32> to vector<8x128xf32>
    %266 = vector.extract_strided_slice %264 {offsets = [0, 0], sizes = [8, 128], strides = [1, 1]} : vector<10x128xf32> to vector<8x128xf32>
    %267 = vector.extract_strided_slice %264 {offsets = [2, 0], sizes = [8, 128], strides = [1, 1]} : vector<10x128xf32> to vector<8x128xf32>
    %c1_i32_107 = arith.constant 1 : i32
    %268 = tpu.dynamic_rotate %265 by %c1_i32_107 dim 1 : vector<8x128xf32>, i32 -> vector<8x128xf32>
    %c0_i32_108 = arith.constant 0 : i32
    %269 = vector.broadcast %c0_i32_108 : i32 to vector<8x128xi32>
    %270 = arith.cmpi sgt, %21, %269 : vector<8x128xi32>
    %271 = arith.select %270, %268, %265 : vector<8x128xi1>, vector<8x128xf32>
    %c127_i32_109 = arith.constant 127 : i32
    %272 = tpu.dynamic_rotate %265 by %c127_i32_109 dim 1 : vector<8x128xf32>, i32 -> vector<8x128xf32>
    %c127_i32_110 = arith.constant 127 : i32
    %273 = vector.broadcast %c127_i32_110 : i32 to vector<8x128xi32>
    %274 = arith.cmpi slt, %21, %273 : vector<8x128xi32>
    %275 = arith.select %274, %272, %265 : vector<8x128xi1>, vector<8x128xf32>
    %c1_i32_111 = arith.constant 1 : i32
    %276 = tpu.dynamic_rotate %266 by %c1_i32_111 dim 1 : vector<8x128xf32>, i32 -> vector<8x128xf32>
    %c0_i32_112 = arith.constant 0 : i32
    %277 = vector.broadcast %c0_i32_112 : i32 to vector<8x128xi32>
    %278 = arith.cmpi sgt, %21, %277 : vector<8x128xi32>
    %279 = arith.select %278, %276, %266 : vector<8x128xi1>, vector<8x128xf32>
    %c127_i32_113 = arith.constant 127 : i32
    %280 = tpu.dynamic_rotate %266 by %c127_i32_113 dim 1 : vector<8x128xf32>, i32 -> vector<8x128xf32>
    %c127_i32_114 = arith.constant 127 : i32
    %281 = vector.broadcast %c127_i32_114 : i32 to vector<8x128xi32>
    %282 = arith.cmpi slt, %21, %281 : vector<8x128xi32>
    %283 = arith.select %282, %280, %266 : vector<8x128xi1>, vector<8x128xf32>
    %c1_i32_115 = arith.constant 1 : i32
    %284 = tpu.dynamic_rotate %267 by %c1_i32_115 dim 1 : vector<8x128xf32>, i32 -> vector<8x128xf32>
    %c0_i32_116 = arith.constant 0 : i32
    %285 = vector.broadcast %c0_i32_116 : i32 to vector<8x128xi32>
    %286 = arith.cmpi sgt, %21, %285 : vector<8x128xi32>
    %287 = arith.select %286, %284, %267 : vector<8x128xi1>, vector<8x128xf32>
    %c127_i32_117 = arith.constant 127 : i32
    %288 = tpu.dynamic_rotate %267 by %c127_i32_117 dim 1 : vector<8x128xf32>, i32 -> vector<8x128xf32>
    %c127_i32_118 = arith.constant 127 : i32
    %289 = vector.broadcast %c127_i32_118 : i32 to vector<8x128xi32>
    %290 = arith.cmpi slt, %21, %289 : vector<8x128xi32>
    %291 = arith.select %290, %288, %267 : vector<8x128xi1>, vector<8x128xf32>
    %292 = arith.addf %271, %275 : vector<8x128xf32>
    %cst_119 = arith.constant 5.000000e-01 : f32
    %293 = vector.broadcast %cst_119 : f32 to vector<8x128xf32>
    %294 = arith.mulf %293, %292 : vector<8x128xf32>
    %295 = arith.addf %266, %267 : vector<8x128xf32>
    %cst_120 = arith.constant 5.000000e-01 : f32
    %296 = vector.broadcast %cst_120 : f32 to vector<8x128xf32>
    %297 = arith.mulf %296, %295 : vector<8x128xf32>
    %298 = arith.addf %279, %291 : vector<8x128xf32>
    %cst_121 = arith.constant 5.000000e-01 : f32
    %299 = vector.broadcast %cst_121 : f32 to vector<8x128xf32>
    %300 = arith.mulf %299, %298 : vector<8x128xf32>
    %301 = arith.addf %283, %287 : vector<8x128xf32>
    %cst_122 = arith.constant 5.000000e-01 : f32
    %302 = vector.broadcast %cst_122 : f32 to vector<8x128xf32>
    %303 = arith.mulf %302, %301 : vector<8x128xf32>
    %304 = arith.subf %291, %279 : vector<8x128xf32>
    %305 = arith.subf %287, %283 : vector<8x128xf32>
    %306 = arith.subf %294, %243 : vector<8x128xf32>
    %307 = arith.subf %297, %251 : vector<8x128xf32>
    %cst_123 = arith.constant 2.500000e-01 : f32
    %308 = vector.broadcast %cst_123 : f32 to vector<8x128xf32>
    %309 = arith.mulf %308, %255 : vector<8x128xf32>
    %310 = arith.subf %300, %309 : vector<8x128xf32>
    %cst_124 = arith.constant 2.500000e-01 : f32
    %311 = vector.broadcast %cst_124 : f32 to vector<8x128xf32>
    %312 = arith.mulf %311, %259 : vector<8x128xf32>
    %313 = arith.subf %303, %312 : vector<8x128xf32>
    %314 = math.absf %304 : vector<8x128xf32>
    %315 = arith.addf %314, %260 : vector<8x128xf32>
    %316 = math.absf %305 : vector<8x128xf32>
    %317 = arith.addf %316, %261 : vector<8x128xf32>
    %318 = arith.subf %315, %317 : vector<8x128xf32>
    %cst_125 = arith.constant 0.000000e+00 : f32
    %319 = vector.broadcast %cst_125 : f32 to vector<8x128xf32>
    %320 = arith.cmpf ogt, %318, %319 : vector<8x128xf32>
    %cst_126 = arith.constant 0.000000e+00 : f32
    %321 = vector.broadcast %cst_126 : f32 to vector<8x128xf32>
    %322 = arith.cmpf olt, %318, %321 : vector<8x128xf32>
    %323 = arith.addf %313, %310 : vector<8x128xf32>
    %cst_127 = arith.constant 5.000000e-01 : f32
    %324 = vector.broadcast %cst_127 : f32 to vector<8x128xf32>
    %325 = arith.mulf %324, %323 : vector<8x128xf32>
    %326 = arith.select %322, %310, %325 : vector<8x128xi1>, vector<8x128xf32>
    %327 = arith.select %320, %313, %326 : vector<8x128xi1>, vector<8x128xf32>
    %328 = arith.select %88, %307, %327 : vector<8x128xi1>, vector<8x128xf32>
    %329 = arith.select %79, %306, %328 : vector<8x128xi1>, vector<8x128xf32>
    %330 = arith.select %61, %262, %329 : vector<8x128xi1>, vector<8x128xf32>
    %cst_128 = arith.constant 0.000000e+00 : f32
    %331 = vector.broadcast %cst_128 : f32 to vector<10x128xf32>
    %332 = arith.select %106, %129, %331 : vector<10x128xi1>, vector<10x128xf32>
    %333 = vector.extract_strided_slice %332 {offsets = [1, 0], sizes = [8, 128], strides = [1, 1]} : vector<10x128xf32> to vector<8x128xf32>
    %334 = vector.extract_strided_slice %332 {offsets = [0, 0], sizes = [8, 128], strides = [1, 1]} : vector<10x128xf32> to vector<8x128xf32>
    %335 = vector.extract_strided_slice %332 {offsets = [2, 0], sizes = [8, 128], strides = [1, 1]} : vector<10x128xf32> to vector<8x128xf32>
    %c1_i32_129 = arith.constant 1 : i32
    %336 = tpu.dynamic_rotate %333 by %c1_i32_129 dim 1 : vector<8x128xf32>, i32 -> vector<8x128xf32>
    %c0_i32_130 = arith.constant 0 : i32
    %337 = vector.broadcast %c0_i32_130 : i32 to vector<8x128xi32>
    %338 = arith.cmpi sgt, %21, %337 : vector<8x128xi32>
    %339 = arith.select %338, %336, %333 : vector<8x128xi1>, vector<8x128xf32>
    %c127_i32_131 = arith.constant 127 : i32
    %340 = tpu.dynamic_rotate %333 by %c127_i32_131 dim 1 : vector<8x128xf32>, i32 -> vector<8x128xf32>
    %c127_i32_132 = arith.constant 127 : i32
    %341 = vector.broadcast %c127_i32_132 : i32 to vector<8x128xi32>
    %342 = arith.cmpi slt, %21, %341 : vector<8x128xi32>
    %343 = arith.select %342, %340, %333 : vector<8x128xi1>, vector<8x128xf32>
    %c1_i32_133 = arith.constant 1 : i32
    %344 = tpu.dynamic_rotate %334 by %c1_i32_133 dim 1 : vector<8x128xf32>, i32 -> vector<8x128xf32>
    %c0_i32_134 = arith.constant 0 : i32
    %345 = vector.broadcast %c0_i32_134 : i32 to vector<8x128xi32>
    %346 = arith.cmpi sgt, %21, %345 : vector<8x128xi32>
    %347 = arith.select %346, %344, %334 : vector<8x128xi1>, vector<8x128xf32>
    %c127_i32_135 = arith.constant 127 : i32
    %348 = tpu.dynamic_rotate %334 by %c127_i32_135 dim 1 : vector<8x128xf32>, i32 -> vector<8x128xf32>
    %c127_i32_136 = arith.constant 127 : i32
    %349 = vector.broadcast %c127_i32_136 : i32 to vector<8x128xi32>
    %350 = arith.cmpi slt, %21, %349 : vector<8x128xi32>
    %351 = arith.select %350, %348, %334 : vector<8x128xi1>, vector<8x128xf32>
    %c1_i32_137 = arith.constant 1 : i32
    %352 = tpu.dynamic_rotate %335 by %c1_i32_137 dim 1 : vector<8x128xf32>, i32 -> vector<8x128xf32>
    %c0_i32_138 = arith.constant 0 : i32
    %353 = vector.broadcast %c0_i32_138 : i32 to vector<8x128xi32>
    %354 = arith.cmpi sgt, %21, %353 : vector<8x128xi32>
    %355 = arith.select %354, %352, %335 : vector<8x128xi1>, vector<8x128xf32>
    %c127_i32_139 = arith.constant 127 : i32
    %356 = tpu.dynamic_rotate %335 by %c127_i32_139 dim 1 : vector<8x128xf32>, i32 -> vector<8x128xf32>
    %c127_i32_140 = arith.constant 127 : i32
    %357 = vector.broadcast %c127_i32_140 : i32 to vector<8x128xi32>
    %358 = arith.cmpi slt, %21, %357 : vector<8x128xi32>
    %359 = arith.select %358, %356, %335 : vector<8x128xi1>, vector<8x128xf32>
    %360 = arith.addf %339, %343 : vector<8x128xf32>
    %cst_141 = arith.constant 5.000000e-01 : f32
    %361 = vector.broadcast %cst_141 : f32 to vector<8x128xf32>
    %362 = arith.mulf %361, %360 : vector<8x128xf32>
    %363 = arith.addf %334, %335 : vector<8x128xf32>
    %cst_142 = arith.constant 5.000000e-01 : f32
    %364 = vector.broadcast %cst_142 : f32 to vector<8x128xf32>
    %365 = arith.mulf %364, %363 : vector<8x128xf32>
    %366 = arith.addf %347, %359 : vector<8x128xf32>
    %cst_143 = arith.constant 5.000000e-01 : f32
    %367 = vector.broadcast %cst_143 : f32 to vector<8x128xf32>
    %368 = arith.mulf %367, %366 : vector<8x128xf32>
    %369 = arith.addf %351, %355 : vector<8x128xf32>
    %cst_144 = arith.constant 5.000000e-01 : f32
    %370 = vector.broadcast %cst_144 : f32 to vector<8x128xf32>
    %371 = arith.mulf %370, %369 : vector<8x128xf32>
    %372 = arith.subf %359, %347 : vector<8x128xf32>
    %373 = arith.subf %355, %351 : vector<8x128xf32>
    %374 = arith.subf %362, %243 : vector<8x128xf32>
    %375 = arith.subf %365, %251 : vector<8x128xf32>
    %cst_145 = arith.constant 2.500000e-01 : f32
    %376 = vector.broadcast %cst_145 : f32 to vector<8x128xf32>
    %377 = arith.mulf %376, %255 : vector<8x128xf32>
    %378 = arith.subf %368, %377 : vector<8x128xf32>
    %cst_146 = arith.constant 2.500000e-01 : f32
    %379 = vector.broadcast %cst_146 : f32 to vector<8x128xf32>
    %380 = arith.mulf %379, %259 : vector<8x128xf32>
    %381 = arith.subf %371, %380 : vector<8x128xf32>
    %382 = math.absf %372 : vector<8x128xf32>
    %383 = arith.addf %382, %260 : vector<8x128xf32>
    %384 = math.absf %373 : vector<8x128xf32>
    %385 = arith.addf %384, %261 : vector<8x128xf32>
    %386 = arith.subf %383, %385 : vector<8x128xf32>
    %cst_147 = arith.constant 0.000000e+00 : f32
    %387 = vector.broadcast %cst_147 : f32 to vector<8x128xf32>
    %388 = arith.cmpf ogt, %386, %387 : vector<8x128xf32>
    %cst_148 = arith.constant 0.000000e+00 : f32
    %389 = vector.broadcast %cst_148 : f32 to vector<8x128xf32>
    %390 = arith.cmpf olt, %386, %389 : vector<8x128xf32>
    %391 = arith.addf %381, %378 : vector<8x128xf32>
    %cst_149 = arith.constant 5.000000e-01 : f32
    %392 = vector.broadcast %cst_149 : f32 to vector<8x128xf32>
    %393 = arith.mulf %392, %391 : vector<8x128xf32>
    %394 = arith.select %390, %378, %393 : vector<8x128xi1>, vector<8x128xf32>
    %395 = arith.select %388, %381, %394 : vector<8x128xi1>, vector<8x128xf32>
    %396 = arith.select %79, %375, %395 : vector<8x128xi1>, vector<8x128xf32>
    %397 = arith.select %88, %374, %396 : vector<8x128xi1>, vector<8x128xf32>
    %398 = arith.select %70, %262, %397 : vector<8x128xi1>, vector<8x128xf32>
    %c0_150 = arith.constant 0 : index
    %c0_151 = arith.constant 0 : index
    %c0_152 = arith.constant 0 : index
    %c0_153 = arith.constant 0 : index
    %399 = vector.load %arg3[%c0_150, %c0_151, %c0_152, %c0_153] : memref<1x3x8x128xf32, #tpu.memory_space<vmem>>, vector<1x1x8x128xf32>
    %400 = vector.shape_cast %399 : vector<1x1x8x128xf32> to vector<8x128xf32>
    %401 = vector.shape_cast %330 : vector<8x128xf32> to vector<1x1x8x128xf32>
    tpu.vector_store %arg3[%c0_150, %c0_151, %c0_152, %c0_153], %401 {strides = array<i32>} : memref<1x3x8x128xf32, #tpu.memory_space<vmem>>, vector<1x1x8x128xf32>,
    %c0_154 = arith.constant 0 : index
    %c1_155 = arith.constant 1 : index
    %c0_156 = arith.constant 0 : index
    %c0_157 = arith.constant 0 : index
    %402 = vector.load %arg3[%c0_154, %c1_155, %c0_156, %c0_157] : memref<1x3x8x128xf32, #tpu.memory_space<vmem>>, vector<1x1x8x128xf32>
    %403 = vector.shape_cast %402 : vector<1x1x8x128xf32> to vector<8x128xf32>
    %404 = vector.shape_cast %209 : vector<8x128xf32> to vector<1x1x8x128xf32>
    tpu.vector_store %arg3[%c0_154, %c1_155, %c0_156, %c0_157], %404 {strides = array<i32>} : memref<1x3x8x128xf32, #tpu.memory_space<vmem>>, vector<1x1x8x128xf32>,
    %c0_158 = arith.constant 0 : index
    %c2_159 = arith.constant 2 : index
    %c0_160 = arith.constant 0 : index
    %c0_161 = arith.constant 0 : index
    %405 = vector.load %arg3[%c0_158, %c2_159, %c0_160, %c0_161] : memref<1x3x8x128xf32, #tpu.memory_space<vmem>>, vector<1x1x8x128xf32>
    %406 = vector.shape_cast %405 : vector<1x1x8x128xf32> to vector<8x128xf32>
    %407 = vector.shape_cast %398 : vector<8x128xf32> to vector<1x1x8x128xf32>
    tpu.vector_store %arg3[%c0_158, %c2_159, %c0_160, %c0_161], %407 {strides = array<i32>} : memref<1x3x8x128xf32, #tpu.memory_space<vmem>>, vector<1x1x8x128xf32>,
    return
  }
  func.func @transform_1(%arg0: i32, %arg1: i32) -> (i32, i32, i32, i32) {
    %c0_i32 = arith.constant 0 : i32
    %c0_i32_0 = arith.constant 0 : i32
    %c0_i32_1 = arith.constant 0 : i32
    return %arg0, %c0_i32, %arg1, %c0_i32_0 : i32, i32, i32, i32
  }
}

</mosaic_0001>

<llo_original>
// kernel: tpu_custom_call.1
$region0: #{tpu_custom_call.1}
  #allocation0 [shape = 'u32[]', space=smem, size = 0x4, offset = 0x4, fixed_abs, tag = 'smem constant byte address 0x4 - core index']
  #allocation1 [shape = 'u32[144,128]{1,0:T(1,128)}', space=vmem, size = 0x12000, scoped, tag = 'internal scratch']
  #allocation2 [shape = 'f32[14,128]{1,0:T(8,128)}', space=vmem, size = 0x2000, scoped, tag = 'scratch operand']
  #allocation3 [shape = 's32[3]{0}', space=sflag, size = 0xc, scoped, tag = 'scratch operand']
  #allocation6 [shape = 's32[]', space=sflag, size = 0x4, offset = 0, fixed_abs, tag = 'sflag constant byte address 0x0 - dummy sync flag']
  #allocation7 [shape = 's32[]', space=sflag, size = 0x4, offset = 0, fixed_abs, tag = 'sflag constant byte address 0x0 - dummy sync flag']
  #allocation8 [shape = 'u32[]', space=smem, size = 0x4, offset = 0x44, fixed_abs, tag = 'smem constant byte address 0x44 - assertion arg 0']
  #allocation9 [shape = 'u32[]', space=smem, size = 0x4, offset = 0x48, fixed_abs, tag = 'smem constant byte address 0x48 - assertion arg 1']
  #allocation10 [shape = 's32[]', space=sflag, size = 0x4, offset = 0, fixed_abs, tag = 'sflag constant byte address 0x0 - dummy sync flag']
  #allocation11 [shape = 's32[]', space=sflag, size = 0x4, offset = 0, fixed_abs, tag = 'sflag constant byte address 0x0 - dummy sync flag']
  #allocation12 [shape = 's32[]', space=sflag, size = 0x4, offset = 0, fixed_abs, tag = 'sflag constant byte address 0x0 - dummy sync flag']
  #allocation13 [shape = 's32[]', space=sflag, size = 0x4, offset = 0, fixed_abs, tag = 'sflag constant byte address 0x0 - dummy sync flag']
  %s0 = inlined_call_operand.hbm [shape: f32[2,32,128], index: 0, kind: input, shape index: {}]
  %s1 = inlined_call_operand.hbm [shape: f32[2,3,32,128], index: 1, kind: output, shape index: {}]
  %s2 = sld [smem:[#allocation0]]
  $region45: #{tpu_custom_call.1} parent=0
    _
  %s4 = ssub.s32 1, %s2
  %s5 = scalar_select 0, %s4, %s2
  $region1: #{tpu_custom_call.1} parent=0
    #allocation4 [shape = 'u8[24576]{0}', space=vmem, size = 0x6000, scoped, tag = 'output window, operand 0']
    #allocation5 [shape = 's32[2]{0}', space=sflag, size = 0x8, scoped, tag = 'scoped memory for tpu_custom_call.1']
    %6 = vsyncpa [#allocation5], 0
    %s7 = scalar_lea.sflag [#allocation5], 1
    %8 = vsyncpa %s7, 0
    loop: start=0, step=1, limit=9
    $region2: #{tpu_custom_call.1} parent=1 // loop_pre_header
      _
    $region3: #{tpu_custom_call.1} parent=1 // loop_header
      %s10 = sphi 0, %s14
      %p11 = scmp.ge.s32.totalorder %s10, 9
      %s16 = sphi 0, %s26
      %s17 = sphi 0, %s22
      %s18 = sphi 0, %s16
      %s19 = sphi 0, %s17
      %s31 = sphi 0, %s33
      %s34 = sphi 0, %s31
      %s44 = sphi 0, %s34
    $region4: #{tpu_custom_call.1} parent=1 // loop_header_branch
      %13 = sbr.rel (%p11) target = $region8
    $region5: #{tpu_custom_call.1} parent=1 // loop_body
      %s15 = ssub.s32 %s10, 1
      %s20 = sadd.s32 1, %s17
      %p21 = scmp.ge.s32.totalorder %s20, 4
      %s22 = scalar_select %p21, 0, %s20
      %s23 = sadd.s32 1, %s16
      %s24 = scalar_select %p21, %s23, %s16
      %p25 = scmp.ge.s32.totalorder %s24, 2
      %s26 = scalar_select %p25, 0, %s24
      %s27 = ssub.s32 %s16, %s26
      %s28 = ssub.s32 %s17, %s22
      %s29 = sor.u32 %s27, %s28
      %p30 = scmp.eq.s32.totalorder %s29, 0
      %s32 = sadd.s32 %s31, 1
      %s33 = scalar_select %p30, %s31, %s32
      %p35 = pneg %p30
      %p36 = scmp.eq.s32.totalorder %s10, 7
      %p37 = por %p35, %p36
      %p38 = scmp.ne.s32.totalorder %s31, %s34
      %p39 = scmp.eq.s32.totalorder %s10, 0
      %p40 = por %p38, %p39
      %p41 = scmp.ne.s32.totalorder %s31, %s34
      %p42 = scmp.eq.s32.totalorder %s15, 7
      %p43 = por %p41, %p42
      %p45 = scmp.ne.s32.totalorder %s34, %s44
      %p46 = scmp.eq.s32.totalorder %s15, 0
      %p47 = por %p45, %p46
      %p48 = scmp.lt.s32.totalorder %s10, 8
      // Predicated region
      $region9: #{tpu_custom_call.1} parent=5 // pred_check
        %p49 = pneg %p48
      $region10: #{tpu_custom_call.1} parent=5 // pred_check_branch
        %51 = sbr.rel (%p49) target = $region12
      $region11: #{tpu_custom_call.1} parent=5 // pred_region
        %p52 = pneg %p40
        %p53 = pneg %p37
        %s54 = sand.u32 %s31, 1
        %s55 = scalar_lea.sflag [#allocation5], %s54
        %s56 = sand.u32 %s31, 1
        %s57 = smul.addr %s56, 24
        %s58 = scalar_lea.vmem [#allocation4], %s57
        %s59 = smul.u32 %s17, 8
        %s60 = ssub.s32 %s59, 3
        %p61 = scmp.gt.s32.totalorder %s60, 0
        %s62 = scalar_select %p61, %s60, 0
        %s63 = sadd.s32 %s59, 8
        %p64 = scmp.lt.s32.totalorder %s63, 29
        %s65 = scalar_select %p64, %s63, 29
        %s66 = smul.u32 %s16, 32
        %s67 = sadd.s32 %s62, %s66
        %s68 = smul.addr %s67, 16
        %s69 = scalar_lea.hbm %s0, %s68
        // Predicated region
        $region13: #{tpu_custom_call.1} parent=11 // pred_check
          _
        $region14: #{tpu_custom_call.1} parent=11 // pred_check_branch
          %71 = sbr.rel target = $region16
        $region15: #{tpu_custom_call.1} parent=11 // pred_region
          %72 = sst [smem:[#allocation8]] [#allocation7]
          %73 = sst [smem:[#allocation9]] [#allocation6]
        $region16: #{tpu_custom_call.1} parent=11 // pred_fallthru
          _
        %75 = shalt.err (0)
        %s77 = sshll.u32 [#allocation2], 4
        %s78 = int_to_ptr.vmem [resolvable:$true] %s77
        %80 = dma.hbm_to_vmem [thread:$0]  %s69, 48, %s78, [#allocation3]
        %s81 = sadd.s32 %s59, %s66
        %s82 = smul.addr %s81, 16
        %s83 = scalar_lea.hbm %s0, %s82
        %s84 = scalar_lea.vmem [#allocation2], 3
        %s85 = scalar_lea.sflag [#allocation3], 1
        // Predicated region
        $region17: #{tpu_custom_call.1} parent=11 // pred_check
          _
        $region18: #{tpu_custom_call.1} parent=11 // pred_check_branch
          %87 = sbr.rel target = $region20
        $region19: #{tpu_custom_call.1} parent=11 // pred_region
          %88 = sst [smem:[#allocation8]] [#allocation11]
          %89 = sst [smem:[#allocation9]] [#allocation10]
        $region20: #{tpu_custom_call.1} parent=11 // pred_fallthru
          _
        %91 = shalt.err (0)
        %s93 = sshll.u32 %s84, 4
        %s94 = int_to_ptr.vmem [resolvable:$true] %s93
        %96 = dma.hbm_to_vmem [thread:$0]  %s83, 128, %s94, %s85
        %s97 = sadd.s32 %s65, %s66
        %s98 = smul.addr %s97, 16
        %s99 = scalar_lea.hbm %s0, %s98
        %s100 = scalar_lea.vmem [#allocation2], 11
        %s101 = scalar_lea.sflag [#allocation3], 2
        // Predicated region
        $region21: #{tpu_custom_call.1} parent=11 // pred_check
          _
        $region22: #{tpu_custom_call.1} parent=11 // pred_check_branch
          %103 = sbr.rel target = $region24
        $region23: #{tpu_custom_call.1} parent=11 // pred_region
          %104 = sst [smem:[#allocation8]] [#allocation13]
          %105 = sst [smem:[#allocation9]] [#allocation12]
        $region24: #{tpu_custom_call.1} parent=11 // pred_fallthru
          _
        %107 = shalt.err (0)
        %s109 = sshll.u32 %s100, 4
        %s110 = int_to_ptr.vmem [resolvable:$true] %s109
        %112 = dma.hbm_to_vmem [thread:$0]  %s99, 48, %s110, %s101
        %v113 = vlaneseq
        %v114 = vand.u32 %v113, 127
        %v115 = vlaneseq
        %v116 = vshrl.u32 %v115, 7
        %v117 = vadd.s32 %v116, 8
        %s118 = ssub.s32 %s59, 1
        %v119 = vstv %s118
        %v120 = vadd.s32 %v116, %v119
        %v121 = vadd.s32 %v117, %v119
        %v122 = vstv %s59
        %v123 = vadd.s32 %v116, %v122
        %vm124 = vcmp.gt.s32.totalorder %v120, 0
        %v125 = vsel %vm124, %v120, 0
        %vm126 = vcmp.gt.s32.totalorder %v121, 0
        %v127 = vsel %vm126, %v121, 0
        %vm128 = vcmp.lt.s32.totalorder %v125, 31
        %v129 = vsel %vm128, %v125, 31
        %vm130 = vcmp.lt.s32.totalorder %v127, 31
        %v131 = vsel %vm130, %v127, 31
        %v132 = vand.u32 %v120, 1
        %v133 = vand.u32 %v121, 1
        %vm134 = vcmp.eq.s32.totalorder %v132, 0
        %vm135 = vcmp.eq.s32.totalorder %v133, 0
        %v136 = vand.u32 %v114, 1
        %vm137 = vcmp.eq.s32.totalorder %v136, 1
        %vm138 = vmand %vm134, %vm137
        %vm139 = vmand %vm135, %vm137
        %vm140 = vcmp.eq.s32.totalorder %v132, 1
        %vm141 = vcmp.eq.s32.totalorder %v133, 1
        %vm142 = vcmp.eq.s32.totalorder %v136, 0
        %vm143 = vmand %vm140, %vm142
        %vm144 = vmand %vm141, %vm142
        %vm145 = vmor %vm138, %vm143
        %vm146 = vmor %vm139, %vm144
        %vm147 = vmxor %vm145, 1
        %vm148 = vmxor %vm146, 1
        %v149 = vand.u32 %v123, 1
        %vm150 = vcmp.eq.s32.totalorder %v149, 0
        %vm151 = vmand %vm150, %vm137
        %vm152 = vcmp.eq.s32.totalorder %v149, 1
        %vm153 = vmand %vm152, %vm142
        %vm154 = vmand %vm150, %vm142
        %vm155 = vmand %vm152, %vm137
        %v156 = vand.u32 %v129, 1
        %v157 = vand.u32 %v131, 1
        %vm158 = vcmp.eq.s32.totalorder %v156, 0
        %vm159 = vcmp.eq.s32.totalorder %v157, 0
        %vm160 = vmand %vm158, %vm137
        %vm161 = vmand %vm159, %vm137
        %vm162 = vcmp.eq.s32.totalorder %v156, 1
        %vm163 = vcmp.eq.s32.totalorder %v157, 1
        %vm164 = vmand %vm162, %vm142
        %vm165 = vmand %vm163, %vm142
        %s166 = smul.u32 3, 1
        %s167 = sshll.u32 %s166, 4
        %168 = dma.done [#allocation3], %s167
        %s169 = smul.u32 8, 1
        %s170 = sshll.u32 %s169, 4
        %171 = dma.done %s85, %s170
        %s172 = sshll.u32 %s166, 4
        %173 = dma.done %s101, %s172
        %p174 = scmp.eq.s32.totalorder %s59, 0
        // Predicated region
        $region25: #{tpu_custom_call.1} parent=11 // pred_check
          %p175 = pneg %p174
        $region26: #{tpu_custom_call.1} parent=11 // pred_check_branch
          %177 = sbr.rel (%p175) target = $region28
        $region27: #{tpu_custom_call.1} parent=11 // pred_region
          %v178 = vld [vmem:[#allocation2 + $0x3] sm:$0x1]
          %179 = vst [vmem:[#allocation2] sm:$0x1] %v178
          %180 = vst [vmem:[#allocation2 + $0x1] sm:$0x1] %v178
          %181 = vst [vmem:[#allocation2 + $0x2] sm:$0x1] %v178
        $region28: #{tpu_custom_call.1} parent=11 // pred_fallthru
          _
        %p182 = scmp.ge.s32.totalorder %s63, 32
        // Predicated region
        $region29: #{tpu_custom_call.1} parent=11 // pred_check
          %p183 = pneg %p182
        $region30: #{tpu_custom_call.1} parent=11 // pred_check_branch
          %185 = sbr.rel (%p183) target = $region32
        $region31: #{tpu_custom_call.1} parent=11 // pred_region
          %v186 = vld [vmem:[#allocation2 + $0xa] sm:$0x1]
          %187 = vst [vmem:[#allocation2 + $0xb] sm:$0x1] %v186
          %188 = vst [vmem:[#allocation2 + $0xc] sm:$0x1] %v186
          %189 = vst [vmem:[#allocation2 + $0xd] sm:$0x1] %v186
        $region32: #{tpu_custom_call.1} parent=11 // pred_fallthru
          _
        %v190 = vld [vmem:[#allocation2 + $0x2] sm:$0xff]
        %v191 = vld [vmem:[#allocation2 + $0xa] sm:$0x3]
        %v192 = vld [vmem:[#allocation2 + $0x1] sm:$0xff]
        %v193 = vld [vmem:[#allocation2 + $0x9] sm:$0x3]
        %v194 = vld [vmem:[#allocation2 + $0x3] sm:$0xff]
        %v195 = vld [vmem:[#allocation2 + $0xb] sm:$0x3]
        %v196 = vld [vmem:[#allocation2] sm:$0xff]
        %v197 = vld [vmem:[#allocation2 + $0x8] sm:$0x3]
        %v198 = vld [vmem:[#allocation2 + $0x4] sm:$0xff]
        %v199 = vld [vmem:[#allocation2 + $0xc] sm:$0x3]
        %200 = vrot.lane.b32.xlu0 %v190, 1
        %v201 = vpop.permute.xlu0 %200
        %202 = vrot.lane.b32.xlu0 %v191, 1
        %v203 = vpop.permute.xlu0 %202
        %vm204 = vcmp.gt.s32.totalorder %v114, 0
        %v205 = vsel %vm204, %v201, %v190
        %v206 = vsel %vm204, %v203, %v191
        %207 = vrot.lane.b32.xlu0 %v190, 127
        %v208 = vpop.permute.xlu0 %207
        %209 = vrot.lane.b32.xlu0 %v191, 127
        %v210 = vpop.permute.xlu0 %209
        %vm211 = vcmp.lt.s32.totalorder %v114, 127
        %v212 = vsel %vm211, %v208, %v190
        %v213 = vsel %vm211, %v210, %v191
        %214 = vrot.lane.b32.xlu0 %v190, 2
        %v215 = vpop.permute.xlu0 %214
        %216 = vrot.lane.b32.xlu0 %v191, 2
        %v217 = vpop.permute.xlu0 %216
        %vm218 = vcmp.gt.s32.totalorder %v114, 1
        %v219 = vsel %vm218, %v215, %v205
        %v220 = vsel %vm218, %v217, %v206
        %221 = vrot.lane.b32.xlu0 %v190, 126
        %v222 = vpop.permute.xlu0 %221
        %223 = vrot.lane.b32.xlu0 %v191, 126
        %v224 = vpop.permute.xlu0 %223
        %vm225 = vcmp.lt.s32.totalorder %v114, 126
        %v226 = vsel %vm225, %v222, %v212
        %v227 = vsel %vm225, %v224, %v213
        %v228 = vadd.f32 %v205, %v212
        %v229 = vadd.f32 %v206, %v213
        %v230 = vmul.f32 %v228, 0.5
        %v231 = vmul.f32 %v229, 0.5
        %v232 = vadd.f32 %v192, %v194
        %v233 = vadd.f32 %v193, %v195
        %v234 = vmul.f32 %v232, 0.5
        %v235 = vmul.f32 %v233, 0.5
        %v236 = vmul.f32 %v190, 2.0
        %v237 = vmul.f32 %v191, 2.0
        %v238 = vsub.f32 %v219, %v236
        %v239 = vsub.f32 %v220, %v237
        %v240 = vadd.f32 %v238, %v226
        %v241 = vadd.f32 %v239, %v227
        %v242 = vsub.f32 %v196, %v236
        %v243 = vsub.f32 %v197, %v237
        %v244 = vadd.f32 %v242, %v198
        %v245 = vadd.f32 %v243, %v199
        %v246 = vsub.f32 %v205, %v212
        %v247 = vsub.f32 %v206, %v213
        %v248 = vsub.f32 %v192, %v194
        %v249 = vsub.f32 %v193, %v195
        %v250 = vmul.f32 %v240, 0.25
        %v251 = vmul.f32 %v241, 0.25
        %v252 = vsub.f32 %v230, %v250
        %v253 = vsub.f32 %v231, %v251
        %v254 = vmul.f32 %v244, 0.25
        %v255 = vmul.f32 %v245, 0.25
        %v256 = vsub.f32 %v234, %v254
        %v257 = vsub.f32 %v235, %v255
        %v258 = vand.u32 2147483647, %v246
        %v259 = vand.u32 2147483647, %v247
        %v260 = vand.u32 2147483647, %v240
        %v261 = vand.u32 2147483647, %v241
        %v262 = vadd.f32 %v258, %v260
        %v263 = vadd.f32 %v259, %v261
        %v264 = vand.u32 2147483647, %v248
        %v265 = vand.u32 2147483647, %v249
        %v266 = vand.u32 2147483647, %v244
        %v267 = vand.u32 2147483647, %v245
        %v268 = vadd.f32 %v264, %v266
        %v269 = vadd.f32 %v265, %v267
        %v270 = vsub.f32 %v262, %v268
        %v271 = vsub.f32 %v263, %v269
        %vm272 = vcmp.gt.f32.partialorder %v270, 0.0
        %vm273 = vcmp.gt.f32.partialorder %v271, 0.0
        %vm274 = vcmp.lt.f32.partialorder %v270, 0.0
        %vm275 = vcmp.lt.f32.partialorder %v271, 0.0
        %v276 = vadd.f32 %v256, %v252
        %v277 = vadd.f32 %v257, %v253
        %v278 = vmul.f32 %v276, 0.5
        %v279 = vmul.f32 %v277, 0.5
        %v280 = vsel %vm274, %v252, %v278
        %v281 = vsel %vm275, %v253, %v279
        %v282 = vsel %vm272, %v256, %v280
        %v283 = vsel %vm273, %v257, %v281
        %v284 = vsel %vm147, %v190, %v282
        %v285 = vsel %vm148, %v191, %v283
        %vm286 = vcmp.lt.s32.totalorder %v120, 0
        %vm287 = vcmp.lt.s32.totalorder %v121, 0
        %v288 = vlaneseq
        %v289 = vshrl.u32 %v288, 7
        %v290 = vsub.s32 1, %v289
        %v291 = vrot.slane %v284, %v290
        %v292 = vsel %vm286, %v291, %v284
        %v293 = vsel %vm287, %v291, %v285
        %vm294 = vcmp.gt.s32.totalorder %v120, 31
        %vm295 = vcmp.gt.s32.totalorder %v121, 31
        %v296 = vlaneseq
        %v297 = vshrl.u32 %v296, 7
        %v298 = vsub.s32 0, %v297
        %v299 = vrot.slane %v293, %v298
        %v300 = vsel %vm294, %v299, %v292
        %v301 = vsel %vm295, %v299, %v293
        %vm304 = vcmask 1046528
        %v305 = vrot.slane %v300, 1
        %v306 = vrot.slane %v301, 1
        %v307 = vsel %vm304, %v305, %v306
        %309 = vrot.lane.b32.xlu0 %v307, 1
        %v310 = vpop.permute.xlu0 %309
        %v311 = vsel %vm204, %v310, %v307
        %312 = vrot.lane.b32.xlu0 %v307, 127
        %v313 = vpop.permute.xlu0 %312
        %v314 = vsel %vm211, %v313, %v307
        %315 = vrot.lane.b32.xlu0 %v300, 1
        %v316 = vpop.permute.xlu0 %315
        %v317 = vsel %vm204, %v316, %v300
        %318 = vrot.lane.b32.xlu0 %v300, 127
        %v319 = vpop.permute.xlu0 %318
        %v320 = vsel %vm211, %v319, %v300
        %vm321 = vcmask 1045504
        %v322 = vrot.slane %v300, 2
        %v323 = vrot.slane %v301, 2
        %v324 = vsel %vm321, %v322, %v323
        %326 = vrot.lane.b32.xlu0 %v324, 1
        %v327 = vpop.permute.xlu0 %326
        %v328 = vsel %vm204, %v327, %v324
        %329 = vrot.lane.b32.xlu0 %v324, 127
        %v330 = vpop.permute.xlu0 %329
        %v331 = vsel %vm211, %v330, %v324
        %v332 = vmul.f32 %v311, 0.25
        %v333 = vmul.f32 %v300, 0.5
        %v334 = vmul.f32 %v301, 0.5
        %v337 = vrot.slane %v333, 1
        %v338 = vrot.slane %v334, 1
        %v339 = vsel %vm304, %v337, %v338
        %v341 = vsub.f32 %v332, %v339
        %v342 = vmul.f32 %v314, 0.25
        %v343 = vadd.f32 %v341, %v342
        %v344 = vmul.f32 %v300, 0.25
        %v345 = vsub.f32 %v344, %v339
        %v346 = vmul.f32 %v301, 0.25
        %v349 = vrot.slane %v344, 2
        %v350 = vrot.slane %v346, 2
        %v351 = vsel %vm321, %v349, %v350
        %v353 = vadd.f32 %v345, %v351
        %v354 = vmul.f32 %v300, 2.0
        %v355 = vmul.f32 %v301, 2.0
        %v358 = vrot.slane %v354, 1
        %v359 = vrot.slane %v355, 1
        %v360 = vsel %vm304, %v358, %v359
        %v362 = vsub.f32 %v317, %v360
        %v363 = vadd.f32 %v362, %v331
        %v364 = vsub.f32 %v320, %v360
        %v365 = vadd.f32 %v364, %v328
        %v366 = vand.u32 2147483647, %v363
        %v367 = vand.u32 2147483647, %v365
        %v368 = vsel %vm160, %v190, 0.0
        %v369 = vsel %vm161, %v191, 0.0
        %v372 = vrot.slane %v368, 1
        %v373 = vrot.slane %v369, 1
        %v374 = vsel %vm304, %v372, %v373
        %376 = vrot.lane.b32.xlu0 %v374, 1
        %v377 = vpop.permute.xlu0 %376
        %v378 = vsel %vm204, %v377, %v374
        %379 = vrot.lane.b32.xlu0 %v374, 127
        %v380 = vpop.permute.xlu0 %379
        %v381 = vsel %vm211, %v380, %v374
        %382 = vrot.lane.b32.xlu0 %v368, 1
        %v383 = vpop.permute.xlu0 %382
        %v384 = vsel %vm204, %v383, %v368
        %385 = vrot.lane.b32.xlu0 %v368, 127
        %v386 = vpop.permute.xlu0 %385
        %v387 = vsel %vm211, %v386, %v368
        %v388 = vrot.slane %v368, 2
        %v389 = vrot.slane %v369, 2
        %v390 = vsel %vm321, %v388, %v389
        %392 = vrot.lane.b32.xlu0 %v390, 1
        %v393 = vpop.permute.xlu0 %392
        %v394 = vsel %vm204, %v393, %v390
        %395 = vrot.lane.b32.xlu0 %v390, 127
        %v396 = vpop.permute.xlu0 %395
        %v397 = vsel %vm211, %v396, %v390
        %v398 = vadd.f32 %v378, %v381
        %v399 = vmul.f32 %v398, 0.5
        %v400 = vadd.f32 %v368, %v390
        %v401 = vmul.f32 %v400, 0.5
        %v402 = vadd.f32 %v384, %v397
        %v403 = vmul.f32 %v402, 0.5
        %v404 = vadd.f32 %v387, %v394
        %v405 = vmul.f32 %v404, 0.5
        %v406 = vsub.f32 %v397, %v384
        %v407 = vsub.f32 %v394, %v387
        %v408 = vsub.f32 %v399, %v343
        %v409 = vsub.f32 %v401, %v353
        %v410 = vmul.f32 %v363, 0.25
        %v411 = vsub.f32 %v403, %v410
        %v412 = vmul.f32 %v365, 0.25
        %v413 = vsub.f32 %v405, %v412
        %v414 = vand.u32 2147483647, %v406
        %v415 = vadd.f32 %v414, %v366
        %v416 = vand.u32 2147483647, %v407
        %v417 = vadd.f32 %v416, %v367
        %v418 = vsub.f32 %v415, %v417
        %vm419 = vcmp.gt.f32.partialorder %v418, 0.0
        %vm420 = vcmp.lt.f32.partialorder %v418, 0.0
        %v421 = vadd.f32 %v413, %v411
        %v422 = vmul.f32 %v421, 0.5
        %v423 = vsel %vm420, %v411, %v422
        %v424 = vsel %vm419, %v413, %v423
        %v425 = vsel %vm155, %v409, %v424
        %v426 = vsel %vm154, %v408, %v425
        %v429 = vrot.slane %v190, 1
        %v430 = vrot.slane %v191, 1
        %v431 = vsel %vm304, %v429, %v430
        %v433 = vsel %vm151, %v431, %v426
        %v434 = vsel %vm164, %v190, 0.0
        %v435 = vsel %vm165, %v191, 0.0
        %v438 = vrot.slane %v434, 1
        %v439 = vrot.slane %v435, 1
        %v440 = vsel %vm304, %v438, %v439
        %442 = vrot.lane.b32.xlu0 %v440, 1
        %v443 = vpop.permute.xlu0 %442
        %v444 = vsel %vm204, %v443, %v440
        %445 = vrot.lane.b32.xlu0 %v440, 127
        %v446 = vpop.permute.xlu0 %445
        %v447 = vsel %vm211, %v446, %v440
        %448 = vrot.lane.b32.xlu0 %v434, 1
        %v449 = vpop.permute.xlu0 %448
        %v450 = vsel %vm204, %v449, %v434
        %451 = vrot.lane.b32.xlu0 %v434, 127
        %v452 = vpop.permute.xlu0 %451
        %v453 = vsel %vm211, %v452, %v434
        %v454 = vrot.slane %v434, 2
        %v455 = vrot.slane %v435, 2
        %v456 = vsel %vm321, %v454, %v455
        %458 = vrot.lane.b32.xlu0 %v456, 1
        %v459 = vpop.permute.xlu0 %458
        %v460 = vsel %vm204, %v459, %v456
        %461 = vrot.lane.b32.xlu0 %v456, 127
        %v462 = vpop.permute.xlu0 %461
        %v463 = vsel %vm211, %v462, %v456
        %v464 = vadd.f32 %v444, %v447
        %v465 = vmul.f32 %v464, 0.5
        %v466 = vadd.f32 %v434, %v456
        %v467 = vmul.f32 %v466, 0.5
        %v468 = vadd.f32 %v450, %v463
        %v469 = vmul.f32 %v468, 0.5
        %v470 = vadd.f32 %v453, %v460
        %v471 = vmul.f32 %v470, 0.5
        %v472 = vsub.f32 %v463, %v450
        %v473 = vsub.f32 %v460, %v453
        %v474 = vsub.f32 %v465, %v343
        %v475 = vsub.f32 %v467, %v353
        %v476 = vsub.f32 %v469, %v410
        %v477 = vsub.f32 %v471, %v412
        %v478 = vand.u32 2147483647, %v472
        %v479 = vadd.f32 %v478, %v366
        %v480 = vand.u32 2147483647, %v473
        %v481 = vadd.f32 %v480, %v367
        %v482 = vsub.f32 %v479, %v481
        %vm483 = vcmp.gt.f32.partialorder %v482, 0.0
        %vm484 = vcmp.lt.f32.partialorder %v482, 0.0
        %v485 = vadd.f32 %v477, %v476
        %v486 = vmul.f32 %v485, 0.5
        %v487 = vsel %vm484, %v476, %v486
        %v488 = vsel %vm483, %v477, %v487
        %v489 = vsel %vm154, %v475, %v488
        %v490 = vsel %vm155, %v474, %v489
        %v491 = vsel %vm153, %v431, %v490
        %492 = vst [vmem:[%s58] sm:$0xff] %v433
        %s493 = scalar_lea.vmem %s58, 8 [#allocation4]
        %494 = vst [vmem:[%s493 - $0x1] sm:$0xfe] %v300
        %495 = vst [vmem:[%s493 + $0x7] sm:$0x1] %v301
        %s496 = scalar_lea.vmem %s58, 16 [#allocation4]
        %497 = vst [vmem:[%s496] sm:$0xff] %v491
        %s498 = sand.u32 %s31, 1
        %s499 = scalar_lea.sflag [#allocation5], %s498
        %s500 = sand.u32 %s31, 1
        %s501 = smul.addr %s500, 24
        %s502 = scalar_lea.vmem [#allocation4], %s501
        // Predicated region
        $region33: #{tpu_custom_call.1} parent=11 // pred_check
          %p503 = pneg %p37
        $region34: #{tpu_custom_call.1} parent=11 // pred_check_branch
          %505 = sbr.rel (%p503) target = $region36
        $region35: #{tpu_custom_call.1} parent=11 // pred_region
          %s507 = ssub.s32 384, 384
          %508 = vsyncadd %s499, %s507
          %s509 = smul.addr %s16, 12
          %s510 = sadd.s32 %s17, %s509
          %s511 = smul.addr %s510, 128
          %s512 = scalar_lea.hbm %s1, %s511
          %s513 = sshll.u32 %s502, 4
          %s514 = int_to_ptr.vmem [resolvable:$true] %s513
          %519 = dma.vmem_to_hbm [thread:$0]  %s514, 384, %s512, %s499, 128, 512, 8
        $region36: #{tpu_custom_call.1} parent=11 // pred_fallthru
          _
      $region12: #{tpu_custom_call.1} parent=5 // pred_fallthru
        _
      %p520 = scmp.le.s32.totalorder 1, %s10
      // Predicated region
      $region37: #{tpu_custom_call.1} parent=5 // pred_check
        %p521 = pneg %p520
      $region38: #{tpu_custom_call.1} parent=5 // pred_check_branch
        %523 = sbr.rel (%p521) target = $region40
      $region39: #{tpu_custom_call.1} parent=5 // pred_region
        %s524 = ssub.s32 %s10, 1
        // Predicated region
        $region41: #{tpu_custom_call.1} parent=39 // pred_check
          %p525 = pneg %p43
        $region42: #{tpu_custom_call.1} parent=39 // pred_check_branch
          %527 = sbr.rel (%p525) target = $region44
        $region43: #{tpu_custom_call.1} parent=39 // pred_region
          %s528 = sand.u32 %s34, 1
          %s529 = scalar_lea.sflag [#allocation5], %s528
          %s530 = sand.u32 %s34, 1
          %s531 = smul.addr %s530, 24
          %s532 = scalar_lea.vmem [#allocation4], %s531
          %533 = dma.done %s529, 384
        $region44: #{tpu_custom_call.1} parent=39 // pred_fallthru
          _
      $region40: #{tpu_custom_call.1} parent=5 // pred_fallthru
        _
    $region6: #{tpu_custom_call.1} parent=1 // loop_footer
      %s14 = sadd.s32 1, %s10
    $region7: #{tpu_custom_call.1} parent=1 // loop_footer_branch
      %9 = sbr.rel target = $region3
    $region8: #{tpu_custom_call.1} parent=1 // loop_exit
      _
    %534 = vsyncpa [#allocation5], 1
    %s535 = scalar_lea.sflag [#allocation5], 1
    %536 = vsyncpa %s535, 1
  %537 = vsyncmov [#allocation3]
  %s538 = vpop.sfrf %537
  %p539 = scmp.eq.s32.totalorder %s538, 0
  %p540 = pneg %p539
  %542 = shalt.err (%p540)
  %s543 = scalar_lea.sflag [#allocation3], 1
  %544 = vsyncmov %s543
  %s545 = vpop.sfrf %544
  %p546 = scmp.eq.s32.totalorder %s545, 0
  %p547 = pneg %p546
  %549 = shalt.err (%p547)
  %s550 = scalar_lea.sflag [#allocation3], 2
  %551 = vsyncmov %s550
  %s552 = vpop.sfrf %551
  %p553 = scmp.eq.s32.totalorder %s552, 0
  %p554 = pneg %p553
  %556 = shalt.err (%p554)

</llo_original>
